<compile_context>
chip_gen: v5e
topology: v5e:2x2
jax: 0.10.0
libtpu: 0.0.40
codegen_flags: <defaults>
</compile_context>

<pallas_src>
import math

import numpy as np

import jax
import jax.numpy as jnp
from jax.experimental import pallas as pl
from jax.experimental.pallas import tpu as pltpu

# ----------------------- small synthetic configuration -----------------------
B, C_IN, H_IMG, W_IMG = 2, 4, 16, 16     # input images (NCHW, like torch)
C_FEAT = 8                               # backbone output channels
POOL = 4                                 # pooler output resolution (POOL x POOL)
R_PER_IMG = 4                            # proposals per image
R = B * R_PER_IMG                        # total RoIs
D = C_FEAT * POOL * POOL                 # flattened pooled feature dim (= 128)
HID = 32                                 # fc6 / fc7 hidden size
NUM_CLASSES = 8                          # predictor classes (incl. background)
SCORE_THRESH = 0.05
BBOX_XFORM_CLIP = math.log(1000.0 / 16.0)
BOX_CODER_WEIGHTS = (10.0, 10.0, 5.0, 5.0)

OUT_COLS = HID + 5 * NUM_CLASSES         # 72 useful output columns per RoI
OUT_PAD = 128                            # lane-dense packed output width
assert OUT_COLS <= OUT_PAD

_VMEM = pl.BlockSpec(memory_space=pltpu.MemorySpace.VMEM)


# --------------------------- static proposal tables --------------------------
def build_static_tables():
    """Deterministic 'RPN' proposals (Python ints -> jit safe) and the pooling
    matrix implementing the fixed-window 2x2-average ROIAlign stand-in.

    pool_mat[(s, r), b*H*W + h*W + w] = 0.25 for the 4 feature-map pixels that
    feed RoI r's pooled spatial position s = ph*POOL + pw.
    """
    boxes = []                                          # (image, x0, y0)
    for b in range(B):
        for r in range(R_PER_IMG):
            boxes.append((b, 2 * r, r))

    pool_mat = np.zeros((POOL * POOL * R, B * H_IMG * W_IMG), np.float32)
    for ri, (b, x0, y0) in enumerate(boxes):
        for ph in range(POOL):
            for pw in range(POOL):
                s = ph * POOL + pw
                for dy in range(2):
                    for dx in range(2):
                        h = y0 + 2 * ph + dy
                        w = x0 + 2 * pw + dx
                        pool_mat[s * R + ri, b * H_IMG * W_IMG + h * W_IMG + w] = 0.25

    concat_boxes = np.array([[x0, y0, x0 + 7, y0 + 7] for (_, x0, y0) in boxes],
                            np.float32)                 # xyxy, [R, 4]
    return jnp.asarray(pool_mat), jnp.asarray(concat_boxes)


# ------------------------------ fused Pallas kernel ---------------------------
def _rcnn_fused_kernel(x_ref, pool_ref, wc_ref, bc_ref,
                       w6_ref, b6_ref, w7_ref, b7_ref,
                       wp_ref, bp_ref, out_ref):
    f32, bf16 = jnp.float32, jnp.bfloat16

    # --- backbone stand-in: 1x1 conv (channel mix) + ReLU, as VPU MACs -------
    # x: [B*H*W, C_IN]; C_IN=4 would waste the MXU (K=4), so do 4 FMAs instead.
    x = x_ref[...]
    wc = wc_ref[...]
    feat = bc_ref[...]                                       # [1, C_FEAT]
    for c in range(C_IN):
        feat = feat + x[:, c:c + 1] * wc[c:c + 1, :]
    feat = jnp.maximum(feat, 0.0)                            # [B*H*W, C_FEAT]

    # --- RoIAlign stand-in: fixed-window average pooling as one MXU matmul ---
    pooled = jnp.dot(pool_ref[...].astype(bf16), feat.astype(bf16),
                     preferred_element_type=f32)             # [(s,r), C_FEAT]

    # --- fc6 + ReLU (== roi_output) -------------------------------------------
    # h6[r, :] = sum_s pooled[s*R + r, :] @ w6[s*C_FEAT:(s+1)*C_FEAT, :]
    # i.e. the (spatial, channel) contraction of the flattened pooled features,
    # done as POOL*POOL block matmuls so no in-kernel relayout/reshape is needed.
    w6 = w6_ref[...]
    acc = jnp.zeros((R, HID), f32)
    for s in range(POOL * POOL):
        p_blk = pooled[s * R:(s + 1) * R, :].astype(bf16)        # [R, C_FEAT]
        w_blk = w6[s * C_FEAT:(s + 1) * C_FEAT, :].astype(bf16)  # [C_FEAT, HID]
        acc = acc + jnp.dot(p_blk, w_blk, preferred_element_type=f32)
    h6 = jnp.maximum(acc + b6_ref[...], 0.0)                 # [R, HID]

    # --- fc7 + ReLU ------------------------------------------------------------
    h7 = jnp.dot(h6.astype(bf16), w7_ref[...].astype(bf16),
                 preferred_element_type=f32) + b7_ref[...]
    h7 = jnp.maximum(h7, 0.0)

    # --- merged predictor: [cls_score | bbox_pred] in one matmul ---------------
    pred = jnp.dot(h7.astype(bf16), wp_ref[...].astype(bf16),
                   preferred_element_type=f32) + bp_ref[...]  # [R, 5*NUM_CLASSES]
    logits = pred[:, :NUM_CLASSES]
    breg = pred[:, NUM_CLASSES:]

    # --- softmax (max-stabilized; divide via EUP approx reciprocal) ------------
    m = jnp.max(logits, axis=-1, keepdims=True)
    e = jnp.exp(logits - m)
    prob = e * pl.reciprocal(jnp.sum(e, axis=-1, keepdims=True), approx=True)

    # --- pack everything into one lane-dense [R, 128] output slab --------------
    out_ref[...] = jnp.zeros_like(out_ref)
    out_ref[:, 0:HID] = h6                                         # roi_output
    out_ref[:, HID:HID + NUM_CLASSES] = prob                       # class_prob
    out_ref[:, HID + NUM_CLASSES:OUT_COLS] = breg                  # box deltas


def rcnn_fused_head(x_flat, pool_mat, params):
    slab = pl.pallas_call(
        _rcnn_fused_kernel,
        out_shape=jax.ShapeDtypeStruct((R, OUT_PAD), jnp.float32),
        in_specs=[_VMEM] * 10,
        out_specs=_VMEM,
    )(x_flat, pool_mat,
      params["w_conv"], params["b_conv"],
      params["w6"], params["b6"],
      params["w7"], params["b7"],
      params["w_pred"], params["b_pred"])
    roi_output = slab[:, :HID]
    class_prob = slab[:, HID:HID + NUM_CLASSES]
    box_regression = slab[:, HID + NUM_CLASSES:OUT_COLS]
    return roi_output, class_prob, box_regression


# --------------------------------- JAX glue -----------------------------------
def decode_boxes(rel_codes, boxes):
    """maskrcnn_benchmark BoxCoder.decode (weights 10,10,5,5, TO_REMOVE=1)."""
    wx, wy, ww, wh = BOX_CODER_WEIGHTS
    widths = boxes[:, 2] - boxes[:, 0] + 1.0
    heights = boxes[:, 3] - boxes[:, 1] + 1.0
    ctr_x = boxes[:, 0] + 0.5 * widths
    ctr_y = boxes[:, 1] + 0.5 * heights

    dx = rel_codes[:, 0::4] / wx
    dy = rel_codes[:, 1::4] / wy
    dw = jnp.minimum(rel_codes[:, 2::4] / ww, BBOX_XFORM_CLIP)
    dh = jnp.minimum(rel_codes[:, 3::4] / wh, BBOX_XFORM_CLIP)

    pred_ctr_x = dx * widths[:, None] + ctr_x[:, None]
    pred_ctr_y = dy * heights[:, None] + ctr_y[:, None]
    pred_w = jnp.exp(dw) * widths[:, None]
    pred_h = jnp.exp(dh) * heights[:, None]

    x1 = pred_ctr_x - 0.5 * pred_w
    y1 = pred_ctr_y - 0.5 * pred_h
    x2 = pred_ctr_x + 0.5 * pred_w - 1.0
    y2 = pred_ctr_y + 0.5 * pred_h - 1.0
    pred = jnp.stack([x1, y1, x2, y2], axis=-1)          # [R, NUM_CLASSES, 4]
    return pred.reshape(rel_codes.shape)                 # [R, NUM_CLASSES*4]


def forward_extract_roioutput(images_nchw, params, pool_mat, concat_boxes):
    """Fused backbone + pooler + box head (Pallas) followed by batched
    box-decode and static-shape per_class_extend (keep-mask instead of
    dynamic nonzero()/cat_boxlist)."""
    x_flat = jnp.transpose(images_nchw, (0, 2, 3, 1)).reshape(B * H_IMG * W_IMG, C_IN)
    roi_output, class_prob, box_regression = rcnn_fused_head(x_flat, pool_mat, params)

    decoded = decode_boxes(box_regression, concat_boxes)          # [R, C*4]

    # per_class_extend, vectorized over all images/RoIs at once (classes 1..C-1)
    boxes_pc = decoded.reshape(B, R_PER_IMG, NUM_CLASSES, 4)[:, :, 1:, :]
    scores_pc = class_prob.reshape(B, R_PER_IMG, NUM_CLASSES)[:, :, 1:]
    labels_pc = jnp.broadcast_to(
        jnp.arange(1, NUM_CLASSES, dtype=jnp.int32)[None, None, :],
        (B, R_PER_IMG, NUM_CLASSES - 1))
    keep = scores_pc > SCORE_THRESH

    return {
        "boxes": boxes_pc,                                        # [B, r, C-1, 4]
        "scores": scores_pc,                                      # [B, r, C-1]
        "labels": labels_pc,                                      # [B, r, C-1]
        "keep": keep,                                             # [B, r, C-1]
        "roi_output": roi_output.reshape(B, R_PER_IMG, HID),      # [B, r, HID]
        # raw head outputs, kept for validation
        "class_prob": class_prob,
        "box_regression": box_regression,
        "decoded_boxes": decoded,
    }


def reference_forward(images_nchw, params, pool_mat):
    """Pure-JAX f32 reference of the fused head (for correctness checking)."""
    x = jnp.transpose(images_nchw, (0, 2, 3, 1)).reshape(B * H_IMG * W_IMG, C_IN)
    feat = jnp.maximum(x @ params["w_conv"] + params["b_conv"], 0.0)
    pooled = pool_mat @ feat                                      # [(s,r), c]
    pooled_flat = (pooled.reshape(POOL * POOL, R, C_FEAT)
                   .transpose(1, 0, 2).reshape(R, D))             # [R, (s,c)]
    h6 = jnp.maximum(pooled_flat @ params["w6"] + params["b6"], 0.0)
    h7 = jnp.maximum(h6 @ params["w7"] + params["b7"], 0.0)
    pred = h7 @ params["w_pred"] + params["b_pred"]
    logits, breg = pred[:, :NUM_CLASSES], pred[:, NUM_CLASSES:]
    prob = jax.nn.softmax(logits, axis=-1)
    return h6, prob, breg


def init_params(key):
    # Weights stored [in, out] (y = x @ W + b).  w6's input dim D is flattened
    # (ph, pw, c); w_pred packs [cls_score | bbox_pred] column-wise.  Stored in
    # f32 here; cast to bf16 at the MXU inputs inside the kernel (at real sizes
    # they would be stored in bf16 to halve weight traffic / VMEM footprint).
    ks = jax.random.split(key, 8)
    scale = 0.05
    return {
        "w_conv": scale * jax.random.normal(ks[0], (C_IN, C_FEAT), jnp.float32),
        "b_conv": scale * jax.random.normal(ks[1], (1, C_FEAT), jnp.float32),
        "w6": scale * jax.random.normal(ks[2], (D, HID), jnp.float32),
        "b6": scale * jax.random.normal(ks[3], (1, HID), jnp.float32),
        "w7": scale * jax.random.normal(ks[4], (HID, HID), jnp.float32),
        "b7": scale * jax.random.normal(ks[5], (1, HID), jnp.float32),
        "w_pred": scale * jax.random.normal(ks[6], (HID, 5 * NUM_CLASSES), jnp.float32),
        "b_pred": scale * jax.random.normal(ks[7], (1, 5 * NUM_CLASSES), jnp.float32),
    }


if __name__ == "__main__":
    key = jax.random.PRNGKey(0)
    k_img, k_par = jax.random.split(key)
    images = jax.random.normal(k_img, (B, C_IN, H_IMG, W_IMG), jnp.float32)
    params = init_params(k_par)
    pool_mat, concat_boxes = build_static_tables()

    forward_jit = jax.jit(forward_extract_roioutput)
    out = forward_jit(images, params, pool_mat, concat_boxes)
    out = jax.block_until_ready(out)

    # per-image result dicts (like the torch results list), pure indexing
    results = [{k: out[k][b] for k in ("boxes", "scores", "labels", "keep", "roi_output")}
               for b in range(B)]

    # shape / sanity checks
    r0 = results[0]
    assert r0["boxes"].shape == (R_PER_IMG, NUM_CLASSES - 1, 4)
    assert r0["scores"].shape == (R_PER_IMG, NUM_CLASSES - 1)
    assert r0["labels"].shape == (R_PER_IMG, NUM_CLASSES - 1)
    assert r0["roi_output"].shape == (R_PER_IMG, HID)
    assert bool(jnp.all(jnp.isfinite(r0["boxes"])))
    assert bool(jnp.all(jnp.isfinite(out["class_prob"])))

    # numerics vs. pure-JAX f32 reference (loose tol: bf16 MXU + approx recip)
    h6_ref, prob_ref, breg_ref = reference_forward(images, params, pool_mat)
    assert bool(jnp.allclose(out["roi_output"].reshape(R, HID), h6_ref,
                             atol=2e-2, rtol=2e-2))
    assert bool(jnp.allclose(out["class_prob"], prob_ref, atol=2e-2, rtol=2e-2))
    assert bool(jnp.allclose(out["box_regression"], breg_ref, atol=2e-2, rtol=2e-2))
    assert bool(jnp.allclose(jnp.sum(out["class_prob"], axis=-1), 1.0, atol=1e-2))

    print("KERNEL_OK")
</pallas_src>

<mosaic_0001>
module attributes {stable_mosaic.version = 11 : i64} {
  func.func @_rcnn_fused_kernel(%arg0: memref<512x4xf32, #tpu.memory_space<vmem>>, %arg1: memref<128x512xf32, #tpu.memory_space<vmem>>, %arg2: memref<4x8xf32, #tpu.memory_space<vmem>>, %arg3: memref<1x8xf32, #tpu.memory_space<vmem>>, %arg4: memref<128x32xf32, #tpu.memory_space<vmem>>, %arg5: memref<1x32xf32, #tpu.memory_space<vmem>>, %arg6: memref<32x32xf32, #tpu.memory_space<vmem>>, %arg7: memref<1x32xf32, #tpu.memory_space<vmem>>, %arg8: memref<32x40xf32, #tpu.memory_space<vmem>>, %arg9: memref<1x40xf32, #tpu.memory_space<vmem>>, %arg10: memref<8x128xf32, #tpu.memory_space<vmem>>) attributes {dimension_semantics = [], scalar_prefetch = 0 : i64, scratch_operands = 0 : i64, tpu.core_type = #tpu.core_type<tc>} {
    %c0 = arith.constant 0 : index
    %c0_0 = arith.constant 0 : index
    %0 = vector.load %arg0[%c0, %c0_0] : memref<512x4xf32, #tpu.memory_space<vmem>>, vector<512x4xf32>
    %c0_1 = arith.constant 0 : index
    %c0_2 = arith.constant 0 : index
    %1 = vector.load %arg2[%c0_1, %c0_2] : memref<4x8xf32, #tpu.memory_space<vmem>>, vector<4x8xf32>
    %c0_3 = arith.constant 0 : index
    %c0_4 = arith.constant 0 : index
    %2 = vector.load %arg3[%c0_3, %c0_4] : memref<1x8xf32, #tpu.memory_space<vmem>>, vector<1x8xf32>
    %3 = vector.extract_strided_slice %0 {offsets = [0, 0], sizes = [512, 1], strides = [1, 1]} : vector<512x4xf32> to vector<512x1xf32>
    %4 = vector.extract_strided_slice %1 {offsets = [0, 0], sizes = [1, 8], strides = [1, 1]} : vector<4x8xf32> to vector<1x8xf32>
    %5 = vector.broadcast %3 : vector<512x1xf32> to vector<512x8xf32>
    %6 = vector.broadcast %4 : vector<1x8xf32> to vector<512x8xf32>
    %7 = arith.mulf %5, %6 : vector<512x8xf32>
    %8 = vector.broadcast %2 : vector<1x8xf32> to vector<512x8xf32>
    %9 = arith.addf %8, %7 : vector<512x8xf32>
    %10 = vector.extract_strided_slice %0 {offsets = [0, 1], sizes = [512, 1], strides = [1, 1]} : vector<512x4xf32> to vector<512x1xf32>
    %11 = vector.extract_strided_slice %1 {offsets = [1, 0], sizes = [1, 8], strides = [1, 1]} : vector<4x8xf32> to vector<1x8xf32>
    %12 = vector.broadcast %10 : vector<512x1xf32> to vector<512x8xf32>
    %13 = vector.broadcast %11 : vector<1x8xf32> to vector<512x8xf32>
    %14 = arith.mulf %12, %13 : vector<512x8xf32>
    %15 = arith.addf %9, %14 : vector<512x8xf32>
    %16 = vector.extract_strided_slice %0 {offsets = [0, 2], sizes = [512, 1], strides = [1, 1]} : vector<512x4xf32> to vector<512x1xf32>
    %17 = vector.extract_strided_slice %1 {offsets = [2, 0], sizes = [1, 8], strides = [1, 1]} : vector<4x8xf32> to vector<1x8xf32>
    %18 = vector.broadcast %16 : vector<512x1xf32> to vector<512x8xf32>
    %19 = vector.broadcast %17 : vector<1x8xf32> to vector<512x8xf32>
    %20 = arith.mulf %18, %19 : vector<512x8xf32>
    %21 = arith.addf %15, %20 : vector<512x8xf32>
    %22 = vector.extract_strided_slice %0 {offsets = [0, 3], sizes = [512, 1], strides = [1, 1]} : vector<512x4xf32> to vector<512x1xf32>
    %23 = vector.extract_strided_slice %1 {offsets = [3, 0], sizes = [1, 8], strides = [1, 1]} : vector<4x8xf32> to vector<1x8xf32>
    %24 = vector.broadcast %22 : vector<512x1xf32> to vector<512x8xf32>
    %25 = vector.broadcast %23 : vector<1x8xf32> to vector<512x8xf32>
    %26 = arith.mulf %24, %25 : vector<512x8xf32>
    %27 = arith.addf %21, %26 : vector<512x8xf32>
    %cst = arith.constant 0.000000e+00 : f32
    %28 = vector.broadcast %cst : f32 to vector<512x8xf32>
    %29 = arith.maximumf %27, %28 : vector<512x8xf32>
    %c0_5 = arith.constant 0 : index
    %c0_6 = arith.constant 0 : index
    %30 = vector.load %arg1[%c0_5, %c0_6] : memref<128x512xf32, #tpu.memory_space<vmem>>, vector<128x512xf32>
    %31 = arith.truncf %30 : vector<128x512xf32> to vector<128x512xbf16>
    %32 = arith.truncf %29 : vector<512x8xf32> to vector<512x8xbf16>
    %cst_7 = arith.constant dense<0.000000e+00> : vector<128x8xf32>
    %33 = tpu.matmul %31, %32, %cst_7 {dimension_numbers = #tpu.dot_dimension_numbers<[1], [0], [0], [1], [0, 0, 1, 1], [], []>} : vector<128x512xbf16>, vector<512x8xbf16>, vector<128x8xf32> -> vector<128x8xf32>
    %c0_8 = arith.constant 0 : index
    %c0_9 = arith.constant 0 : index
    %34 = vector.load %arg4[%c0_8, %c0_9] : memref<128x32xf32, #tpu.memory_space<vmem>>, vector<128x32xf32>
    %cst_10 = arith.constant 0.000000e+00 : f32
    %35 = vector.broadcast %cst_10 : f32 to vector<8x32xf32>
    %36 = vector.extract_strided_slice %33 {offsets = [0, 0], sizes = [8, 8], strides = [1, 1]} : vector<128x8xf32> to vector<8x8xf32>
    %37 = arith.truncf %36 : vector<8x8xf32> to vector<8x8xbf16>
    %38 = vector.extract_strided_slice %34 {offsets = [0, 0], sizes = [8, 32], strides = [1, 1]} : vector<128x32xf32> to vector<8x32xf32>
    %39 = arith.truncf %38 : vector<8x32xf32> to vector<8x32xbf16>
    %cst_11 = arith.constant dense<0.000000e+00> : vector<8x32xf32>
    %40 = tpu.matmul %37, %39, %cst_11 {dimension_numbers = #tpu.dot_dimension_numbers<[1], [0], [0], [1], [0, 0, 1, 1], [], []>} : vector<8x8xbf16>, vector<8x32xbf16>, vector<8x32xf32> -> vector<8x32xf32>
    %41 = arith.addf %35, %40 : vector<8x32xf32>
    %42 = vector.extract_strided_slice %33 {offsets = [8, 0], sizes = [8, 8], strides = [1, 1]} : vector<128x8xf32> to vector<8x8xf32>
    %43 = arith.truncf %42 : vector<8x8xf32> to vector<8x8xbf16>
    %44 = vector.extract_strided_slice %34 {offsets = [8, 0], sizes = [8, 32], strides = [1, 1]} : vector<128x32xf32> to vector<8x32xf32>
    %45 = arith.truncf %44 : vector<8x32xf32> to vector<8x32xbf16>
    %cst_12 = arith.constant dense<0.000000e+00> : vector<8x32xf32>
    %46 = tpu.matmul %43, %45, %cst_12 {dimension_numbers = #tpu.dot_dimension_numbers<[1], [0], [0], [1], [0, 0, 1, 1], [], []>} : vector<8x8xbf16>, vector<8x32xbf16>, vector<8x32xf32> -> vector<8x32xf32>
    %47 = arith.addf %41, %46 : vector<8x32xf32>
    %48 = vector.extract_strided_slice %33 {offsets = [16, 0], sizes = [8, 8], strides = [1, 1]} : vector<128x8xf32> to vector<8x8xf32>
    %49 = arith.truncf %48 : vector<8x8xf32> to vector<8x8xbf16>
    %50 = vector.extract_strided_slice %34 {offsets = [16, 0], sizes = [8, 32], strides = [1, 1]} : vector<128x32xf32> to vector<8x32xf32>
    %51 = arith.truncf %50 : vector<8x32xf32> to vector<8x32xbf16>
    %cst_13 = arith.constant dense<0.000000e+00> : vector<8x32xf32>
    %52 = tpu.matmul %49, %51, %cst_13 {dimension_numbers = #tpu.dot_dimension_numbers<[1], [0], [0], [1], [0, 0, 1, 1], [], []>} : vector<8x8xbf16>, vector<8x32xbf16>, vector<8x32xf32> -> vector<8x32xf32>
    %53 = arith.addf %47, %52 : vector<8x32xf32>
    %54 = vector.extract_strided_slice %33 {offsets = [24, 0], sizes = [8, 8], strides = [1, 1]} : vector<128x8xf32> to vector<8x8xf32>
    %55 = arith.truncf %54 : vector<8x8xf32> to vector<8x8xbf16>
    %56 = vector.extract_strided_slice %34 {offsets = [24, 0], sizes = [8, 32], strides = [1, 1]} : vector<128x32xf32> to vector<8x32xf32>
    %57 = arith.truncf %56 : vector<8x32xf32> to vector<8x32xbf16>
    %cst_14 = arith.constant dense<0.000000e+00> : vector<8x32xf32>
    %58 = tpu.matmul %55, %57, %cst_14 {dimension_numbers = #tpu.dot_dimension_numbers<[1], [0], [0], [1], [0, 0, 1, 1], [], []>} : vector<8x8xbf16>, vector<8x32xbf16>, vector<8x32xf32> -> vector<8x32xf32>
    %59 = arith.addf %53, %58 : vector<8x32xf32>
    %60 = vector.extract_strided_slice %33 {offsets = [32, 0], sizes = [8, 8], strides = [1, 1]} : vector<128x8xf32> to vector<8x8xf32>
    %61 = arith.truncf %60 : vector<8x8xf32> to vector<8x8xbf16>
    %62 = vector.extract_strided_slice %34 {offsets = [32, 0], sizes = [8, 32], strides = [1, 1]} : vector<128x32xf32> to vector<8x32xf32>
    %63 = arith.truncf %62 : vector<8x32xf32> to vector<8x32xbf16>
    %cst_15 = arith.constant dense<0.000000e+00> : vector<8x32xf32>
    %64 = tpu.matmul %61, %63, %cst_15 {dimension_numbers = #tpu.dot_dimension_numbers<[1], [0], [0], [1], [0, 0, 1, 1], [], []>} : vector<8x8xbf16>, vector<8x32xbf16>, vector<8x32xf32> -> vector<8x32xf32>
    %65 = arith.addf %59, %64 : vector<8x32xf32>
    %66 = vector.extract_strided_slice %33 {offsets = [40, 0], sizes = [8, 8], strides = [1, 1]} : vector<128x8xf32> to vector<8x8xf32>
    %67 = arith.truncf %66 : vector<8x8xf32> to vector<8x8xbf16>
    %68 = vector.extract_strided_slice %34 {offsets = [40, 0], sizes = [8, 32], strides = [1, 1]} : vector<128x32xf32> to vector<8x32xf32>
    %69 = arith.truncf %68 : vector<8x32xf32> to vector<8x32xbf16>
    %cst_16 = arith.constant dense<0.000000e+00> : vector<8x32xf32>
    %70 = tpu.matmul %67, %69, %cst_16 {dimension_numbers = #tpu.dot_dimension_numbers<[1], [0], [0], [1], [0, 0, 1, 1], [], []>} : vector<8x8xbf16>, vector<8x32xbf16>, vector<8x32xf32> -> vector<8x32xf32>
    %71 = arith.addf %65, %70 : vector<8x32xf32>
    %72 = vector.extract_strided_slice %33 {offsets = [48, 0], sizes = [8, 8], strides = [1, 1]} : vector<128x8xf32> to vector<8x8xf32>
    %73 = arith.truncf %72 : vector<8x8xf32> to vector<8x8xbf16>
    %74 = vector.extract_strided_slice %34 {offsets = [48, 0], sizes = [8, 32], strides = [1, 1]} : vector<128x32xf32> to vector<8x32xf32>
    %75 = arith.truncf %74 : vector<8x32xf32> to vector<8x32xbf16>
    %cst_17 = arith.constant dense<0.000000e+00> : vector<8x32xf32>
    %76 = tpu.matmul %73, %75, %cst_17 {dimension_numbers = #tpu.dot_dimension_numbers<[1], [0], [0], [1], [0, 0, 1, 1], [], []>} : vector<8x8xbf16>, vector<8x32xbf16>, vector<8x32xf32> -> vector<8x32xf32>
    %77 = arith.addf %71, %76 : vector<8x32xf32>
    %78 = vector.extract_strided_slice %33 {offsets = [56, 0], sizes = [8, 8], strides = [1, 1]} : vector<128x8xf32> to vector<8x8xf32>
    %79 = arith.truncf %78 : vector<8x8xf32> to vector<8x8xbf16>
    %80 = vector.extract_strided_slice %34 {offsets = [56, 0], sizes = [8, 32], strides = [1, 1]} : vector<128x32xf32> to vector<8x32xf32>
    %81 = arith.truncf %80 : vector<8x32xf32> to vector<8x32xbf16>
    %cst_18 = arith.constant dense<0.000000e+00> : vector<8x32xf32>
    %82 = tpu.matmul %79, %81, %cst_18 {dimension_numbers = #tpu.dot_dimension_numbers<[1], [0], [0], [1], [0, 0, 1, 1], [], []>} : vector<8x8xbf16>, vector<8x32xbf16>, vector<8x32xf32> -> vector<8x32xf32>
    %83 = arith.addf %77, %82 : vector<8x32xf32>
    %84 = vector.extract_strided_slice %33 {offsets = [64, 0], sizes = [8, 8], strides = [1, 1]} : vector<128x8xf32> to vector<8x8xf32>
    %85 = arith.truncf %84 : vector<8x8xf32> to vector<8x8xbf16>
    %86 = vector.extract_strided_slice %34 {offsets = [64, 0], sizes = [8, 32], strides = [1, 1]} : vector<128x32xf32> to vector<8x32xf32>
    %87 = arith.truncf %86 : vector<8x32xf32> to vector<8x32xbf16>
    %cst_19 = arith.constant dense<0.000000e+00> : vector<8x32xf32>
    %88 = tpu.matmul %85, %87, %cst_19 {dimension_numbers = #tpu.dot_dimension_numbers<[1], [0], [0], [1], [0, 0, 1, 1], [], []>} : vector<8x8xbf16>, vector<8x32xbf16>, vector<8x32xf32> -> vector<8x32xf32>
    %89 = arith.addf %83, %88 : vector<8x32xf32>
    %90 = vector.extract_strided_slice %33 {offsets = [72, 0], sizes = [8, 8], strides = [1, 1]} : vector<128x8xf32> to vector<8x8xf32>
    %91 = arith.truncf %90 : vector<8x8xf32> to vector<8x8xbf16>
    %92 = vector.extract_strided_slice %34 {offsets = [72, 0], sizes = [8, 32], strides = [1, 1]} : vector<128x32xf32> to vector<8x32xf32>
    %93 = arith.truncf %92 : vector<8x32xf32> to vector<8x32xbf16>
    %cst_20 = arith.constant dense<0.000000e+00> : vector<8x32xf32>
    %94 = tpu.matmul %91, %93, %cst_20 {dimension_numbers = #tpu.dot_dimension_numbers<[1], [0], [0], [1], [0, 0, 1, 1], [], []>} : vector<8x8xbf16>, vector<8x32xbf16>, vector<8x32xf32> -> vector<8x32xf32>
    %95 = arith.addf %89, %94 : vector<8x32xf32>
    %96 = vector.extract_strided_slice %33 {offsets = [80, 0], sizes = [8, 8], strides = [1, 1]} : vector<128x8xf32> to vector<8x8xf32>
    %97 = arith.truncf %96 : vector<8x8xf32> to vector<8x8xbf16>
    %98 = vector.extract_strided_slice %34 {offsets = [80, 0], sizes = [8, 32], strides = [1, 1]} : vector<128x32xf32> to vector<8x32xf32>
    %99 = arith.truncf %98 : vector<8x32xf32> to vector<8x32xbf16>
    %cst_21 = arith.constant dense<0.000000e+00> : vector<8x32xf32>
    %100 = tpu.matmul %97, %99, %cst_21 {dimension_numbers = #tpu.dot_dimension_numbers<[1], [0], [0], [1], [0, 0, 1, 1], [], []>} : vector<8x8xbf16>, vector<8x32xbf16>, vector<8x32xf32> -> vector<8x32xf32>
    %101 = arith.addf %95, %100 : vector<8x32xf32>
    %102 = vector.extract_strided_slice %33 {offsets = [88, 0], sizes = [8, 8], strides = [1, 1]} : vector<128x8xf32> to vector<8x8xf32>
    %103 = arith.truncf %102 : vector<8x8xf32> to vector<8x8xbf16>
    %104 = vector.extract_strided_slice %34 {offsets = [88, 0], sizes = [8, 32], strides = [1, 1]} : vector<128x32xf32> to vector<8x32xf32>
    %105 = arith.truncf %104 : vector<8x32xf32> to vector<8x32xbf16>
    %cst_22 = arith.constant dense<0.000000e+00> : vector<8x32xf32>
    %106 = tpu.matmul %103, %105, %cst_22 {dimension_numbers = #tpu.dot_dimension_numbers<[1], [0], [0], [1], [0, 0, 1, 1], [], []>} : vector<8x8xbf16>, vector<8x32xbf16>, vector<8x32xf32> -> vector<8x32xf32>
    %107 = arith.addf %101, %106 : vector<8x32xf32>
    %108 = vector.extract_strided_slice %33 {offsets = [96, 0], sizes = [8, 8], strides = [1, 1]} : vector<128x8xf32> to vector<8x8xf32>
    %109 = arith.truncf %108 : vector<8x8xf32> to vector<8x8xbf16>
    %110 = vector.extract_strided_slice %34 {offsets = [96, 0], sizes = [8, 32], strides = [1, 1]} : vector<128x32xf32> to vector<8x32xf32>
    %111 = arith.truncf %110 : vector<8x32xf32> to vector<8x32xbf16>
    %cst_23 = arith.constant dense<0.000000e+00> : vector<8x32xf32>
    %112 = tpu.matmul %109, %111, %cst_23 {dimension_numbers = #tpu.dot_dimension_numbers<[1], [0], [0], [1], [0, 0, 1, 1], [], []>} : vector<8x8xbf16>, vector<8x32xbf16>, vector<8x32xf32> -> vector<8x32xf32>
    %113 = arith.addf %107, %112 : vector<8x32xf32>
    %114 = vector.extract_strided_slice %33 {offsets = [104, 0], sizes = [8, 8], strides = [1, 1]} : vector<128x8xf32> to vector<8x8xf32>
    %115 = arith.truncf %114 : vector<8x8xf32> to vector<8x8xbf16>
    %116 = vector.extract_strided_slice %34 {offsets = [104, 0], sizes = [8, 32], strides = [1, 1]} : vector<128x32xf32> to vector<8x32xf32>
    %117 = arith.truncf %116 : vector<8x32xf32> to vector<8x32xbf16>
    %cst_24 = arith.constant dense<0.000000e+00> : vector<8x32xf32>
    %118 = tpu.matmul %115, %117, %cst_24 {dimension_numbers = #tpu.dot_dimension_numbers<[1], [0], [0], [1], [0, 0, 1, 1], [], []>} : vector<8x8xbf16>, vector<8x32xbf16>, vector<8x32xf32> -> vector<8x32xf32>
    %119 = arith.addf %113, %118 : vector<8x32xf32>
    %120 = vector.extract_strided_slice %33 {offsets = [112, 0], sizes = [8, 8], strides = [1, 1]} : vector<128x8xf32> to vector<8x8xf32>
    %121 = arith.truncf %120 : vector<8x8xf32> to vector<8x8xbf16>
    %122 = vector.extract_strided_slice %34 {offsets = [112, 0], sizes = [8, 32], strides = [1, 1]} : vector<128x32xf32> to vector<8x32xf32>
    %123 = arith.truncf %122 : vector<8x32xf32> to vector<8x32xbf16>
    %cst_25 = arith.constant dense<0.000000e+00> : vector<8x32xf32>
    %124 = tpu.matmul %121, %123, %cst_25 {dimension_numbers = #tpu.dot_dimension_numbers<[1], [0], [0], [1], [0, 0, 1, 1], [], []>} : vector<8x8xbf16>, vector<8x32xbf16>, vector<8x32xf32> -> vector<8x32xf32>
    %125 = arith.addf %119, %124 : vector<8x32xf32>
    %126 = vector.extract_strided_slice %33 {offsets = [120, 0], sizes = [8, 8], strides = [1, 1]} : vector<128x8xf32> to vector<8x8xf32>
    %127 = arith.truncf %126 : vector<8x8xf32> to vector<8x8xbf16>
    %128 = vector.extract_strided_slice %34 {offsets = [120, 0], sizes = [8, 32], strides = [1, 1]} : vector<128x32xf32> to vector<8x32xf32>
    %129 = arith.truncf %128 : vector<8x32xf32> to vector<8x32xbf16>
    %cst_26 = arith.constant dense<0.000000e+00> : vector<8x32xf32>
    %130 = tpu.matmul %127, %129, %cst_26 {dimension_numbers = #tpu.dot_dimension_numbers<[1], [0], [0], [1], [0, 0, 1, 1], [], []>} : vector<8x8xbf16>, vector<8x32xbf16>, vector<8x32xf32> -> vector<8x32xf32>
    %131 = arith.addf %125, %130 : vector<8x32xf32>
    %c0_27 = arith.constant 0 : index
    %c0_28 = arith.constant 0 : index
    %132 = vector.load %arg5[%c0_27, %c0_28] : memref<1x32xf32, #tpu.memory_space<vmem>>, vector<1x32xf32>
    %133 = vector.broadcast %132 : vector<1x32xf32> to vector<8x32xf32>
    %134 = arith.addf %131, %133 : vector<8x32xf32>
    %cst_29 = arith.constant 0.000000e+00 : f32
    %135 = vector.broadcast %cst_29 : f32 to vector<8x32xf32>
    %136 = arith.maximumf %134, %135 : vector<8x32xf32>
    %137 = arith.truncf %136 : vector<8x32xf32> to vector<8x32xbf16>
    %c0_30 = arith.constant 0 : index
    %c0_31 = arith.constant 0 : index
    %138 = vector.load %arg6[%c0_30, %c0_31] : memref<32x32xf32, #tpu.memory_space<vmem>>, vector<32x32xf32>
    %139 = arith.truncf %138 : vector<32x32xf32> to vector<32x32xbf16>
    %cst_32 = arith.constant dense<0.000000e+00> : vector<8x32xf32>
    %140 = tpu.matmul %137, %139, %cst_32 {dimension_numbers = #tpu.dot_dimension_numbers<[1], [0], [0], [1], [0, 0, 1, 1], [], []>} : vector<8x32xbf16>, vector<32x32xbf16>, vector<8x32xf32> -> vector<8x32xf32>
    %c0_33 = arith.constant 0 : index
    %c0_34 = arith.constant 0 : index
    %141 = vector.load %arg7[%c0_33, %c0_34] : memref<1x32xf32, #tpu.memory_space<vmem>>, vector<1x32xf32>
    %142 = vector.broadcast %141 : vector<1x32xf32> to vector<8x32xf32>
    %143 = arith.addf %140, %142 : vector<8x32xf32>
    %cst_35 = arith.constant 0.000000e+00 : f32
    %144 = vector.broadcast %cst_35 : f32 to vector<8x32xf32>
    %145 = arith.maximumf %143, %144 : vector<8x32xf32>
    %146 = arith.truncf %145 : vector<8x32xf32> to vector<8x32xbf16>
    %c0_36 = arith.constant 0 : index
    %c0_37 = arith.constant 0 : index
    %147 = vector.load %arg8[%c0_36, %c0_37] : memref<32x40xf32, #tpu.memory_space<vmem>>, vector<32x40xf32>
    %148 = arith.truncf %147 : vector<32x40xf32> to vector<32x40xbf16>
    %cst_38 = arith.constant dense<0.000000e+00> : vector<8x40xf32>
    %149 = tpu.matmul %146, %148, %cst_38 {dimension_numbers = #tpu.dot_dimension_numbers<[1], [0], [0], [1], [0, 0, 1, 1], [], []>} : vector<8x32xbf16>, vector<32x40xbf16>, vector<8x40xf32> -> vector<8x40xf32>
    %c0_39 = arith.constant 0 : index
    %c0_40 = arith.constant 0 : index
    %150 = vector.load %arg9[%c0_39, %c0_40] : memref<1x40xf32, #tpu.memory_space<vmem>>, vector<1x40xf32>
    %151 = vector.broadcast %150 : vector<1x40xf32> to vector<8x40xf32>
    %152 = arith.addf %149, %151 : vector<8x40xf32>
    %153 = vector.extract_strided_slice %152 {offsets = [0, 0], sizes = [8, 8], strides = [1, 1]} : vector<8x40xf32> to vector<8x8xf32>
    %154 = vector.extract_strided_slice %152 {offsets = [0, 8], sizes = [8, 32], strides = [1, 1]} : vector<8x40xf32> to vector<8x32xf32>
    %cst_41 = arith.constant dense<0xFF800000> : vector<8xf32>
    %155 = vector.multi_reduction <maximumf>, %153, %cst_41 [1] : vector<8x8xf32> to vector<8xf32>
    %156 = vector.shape_cast %155 : vector<8xf32> to vector<8x1xf32>
    %157 = vector.broadcast %156 : vector<8x1xf32> to vector<8x8xf32>
    %158 = arith.subf %153, %157 : vector<8x8xf32>
    %159 = math.exp %158 : vector<8x8xf32>
    %cst_42 = arith.constant dense<0.000000e+00> : vector<8xf32>
    %160 = vector.multi_reduction <add>, %159, %cst_42 [1] : vector<8x8xf32> to vector<8xf32>
    %161 = vector.shape_cast %160 : vector<8xf32> to vector<8x1xf32>
    %162 = tpu.reciprocal %161 {approx = true} : vector<8x1xf32> -> vector<8x1xf32>
    %163 = vector.broadcast %162 : vector<8x1xf32> to vector<8x8xf32>
    %164 = arith.mulf %159, %163 : vector<8x8xf32>
    %cst_43 = arith.constant 0.000000e+00 : f32
    %165 = vector.broadcast %cst_43 : f32 to vector<8x128xf32>
    %c0_44 = arith.constant 0 : index
    %c0_45 = arith.constant 0 : index
    %166 = vector.load %arg10[%c0_44, %c0_45] : memref<8x128xf32, #tpu.memory_space<vmem>>, vector<8x128xf32>
    tpu.vector_store %arg10[%c0_44, %c0_45], %165 {strides = array<i32>} : memref<8x128xf32, #tpu.memory_space<vmem>>, vector<8x128xf32>,
    %c0_46 = arith.constant 0 : index
    %c0_47 = arith.constant 0 : index
    %167 = vector.load %arg10[%c0_46, %c0_47] : memref<8x128xf32, #tpu.memory_space<vmem>>, vector<8x32xf32>
    tpu.vector_store %arg10[%c0_46, %c0_47], %136 {strides = array<i32>} : memref<8x128xf32, #tpu.memory_space<vmem>>, vector<8x32xf32>,
    %c0_48 = arith.constant 0 : index
    %c32 = arith.constant 32 : index
    %168 = vector.load %arg10[%c0_48, %c32] : memref<8x128xf32, #tpu.memory_space<vmem>>, vector<8x8xf32>
    tpu.vector_store %arg10[%c0_48, %c32], %164 {strides = array<i32>} : memref<8x128xf32, #tpu.memory_space<vmem>>, vector<8x8xf32>,
    %c0_49 = arith.constant 0 : index
    %c40 = arith.constant 40 : index
    %169 = vector.load %arg10[%c0_49, %c40] : memref<8x128xf32, #tpu.memory_space<vmem>>, vector<8x32xf32>
    tpu.vector_store %arg10[%c0_49, %c40], %154 {strides = array<i32>} : memref<8x128xf32, #tpu.memory_space<vmem>>, vector<8x32xf32>,
    return
  }
}

</mosaic_0001>

<llo_original>
// kernel: forward_extract_roioutput.1
$region0: #{forward_extract_roioutput.1}
  #allocation0 [shape = 'u32[]', space=smem, size = 0x4, offset = 0x4, fixed_abs, tag = 'smem constant byte address 0x4 - core index']
  #allocation1 [shape = 'u32[72,128]{1,0:T(1,128)}', space=vmem, size = 0x9000, scoped, tag = 'internal scratch']
  %s0 = inlined_call_operand.vmem [shape: f32[512,4], index: 0, kind: input, shape index: {}]
  %s1 = inlined_call_operand.vmem [shape: f32[128,512], index: 1, kind: input, shape index: {}]
  %s2 = inlined_call_operand.vmem [shape: f32[4,8], index: 2, kind: input, shape index: {}]
  %s3 = inlined_call_operand.vmem [shape: f32[1,8], index: 3, kind: input, shape index: {}]
  %s4 = inlined_call_operand.vmem [shape: f32[128,32], index: 4, kind: input, shape index: {}]
  %s5 = inlined_call_operand.vmem [shape: f32[1,32], index: 5, kind: input, shape index: {}]
  %s6 = inlined_call_operand.vmem [shape: f32[32,32], index: 6, kind: input, shape index: {}]
  %s7 = inlined_call_operand.vmem [shape: f32[1,32], index: 7, kind: input, shape index: {}]
  %s8 = inlined_call_operand.vmem [shape: f32[32,40], index: 8, kind: input, shape index: {}]
  %s9 = inlined_call_operand.vmem [shape: f32[1,40], index: 9, kind: input, shape index: {}]
  %s10 = inlined_call_operand.vmem [shape: f32[8,128], index: 10, kind: output, shape index: {}]
  %s11 = sld [smem:[#allocation0]]
  $region50: #{forward_extract_roioutput.1} parent=0
    _
  %s13 = ssub.s32 1, %s11
  %s14 = scalar_select 0, %s13, %s11
  // Predicated region
  $region2: #{forward_extract_roioutput.1} parent=0 // pred_check
    _
  $region3: #{forward_extract_roioutput.1} parent=0 // pred_check_branch
    %16 = sbr.rel (0) target = $region5
  $region4: #{forward_extract_roioutput.1} parent=0 // pred_region
    _
  $region5: #{forward_extract_roioutput.1} parent=0 // pred_fallthru
    _
  // Predicated region
  $region6: #{forward_extract_roioutput.1} parent=0 // pred_check
    _
  $region7: #{forward_extract_roioutput.1} parent=0 // pred_check_branch
    %18 = sbr.rel (0) target = $region9
  $region8: #{forward_extract_roioutput.1} parent=0 // pred_region
    _
  $region9: #{forward_extract_roioutput.1} parent=0 // pred_fallthru
    _
  // Predicated region
  $region10: #{forward_extract_roioutput.1} parent=0 // pred_check
    _
  $region11: #{forward_extract_roioutput.1} parent=0 // pred_check_branch
    %20 = sbr.rel (0) target = $region13
  $region12: #{forward_extract_roioutput.1} parent=0 // pred_region
    _
  $region13: #{forward_extract_roioutput.1} parent=0 // pred_fallthru
    _
  // Predicated region
  $region14: #{forward_extract_roioutput.1} parent=0 // pred_check
    _
  $region15: #{forward_extract_roioutput.1} parent=0 // pred_check_branch
    %22 = sbr.rel (0) target = $region17
  $region16: #{forward_extract_roioutput.1} parent=0 // pred_region
    _
  $region17: #{forward_extract_roioutput.1} parent=0 // pred_fallthru
    _
  // Predicated region
  $region18: #{forward_extract_roioutput.1} parent=0 // pred_check
    _
  $region19: #{forward_extract_roioutput.1} parent=0 // pred_check_branch
    %24 = sbr.rel (0) target = $region21
  $region20: #{forward_extract_roioutput.1} parent=0 // pred_region
    _
  $region21: #{forward_extract_roioutput.1} parent=0 // pred_fallthru
    _
  // Predicated region
  $region22: #{forward_extract_roioutput.1} parent=0 // pred_check
    _
  $region23: #{forward_extract_roioutput.1} parent=0 // pred_check_branch
    %26 = sbr.rel (0) target = $region25
  $region24: #{forward_extract_roioutput.1} parent=0 // pred_region
    _
  $region25: #{forward_extract_roioutput.1} parent=0 // pred_fallthru
    _
  // Predicated region
  $region26: #{forward_extract_roioutput.1} parent=0 // pred_check
    _
  $region27: #{forward_extract_roioutput.1} parent=0 // pred_check_branch
    %28 = sbr.rel (0) target = $region29
  $region28: #{forward_extract_roioutput.1} parent=0 // pred_region
    _
  $region29: #{forward_extract_roioutput.1} parent=0 // pred_fallthru
    _
  // Predicated region
  $region30: #{forward_extract_roioutput.1} parent=0 // pred_check
    _
  $region31: #{forward_extract_roioutput.1} parent=0 // pred_check_branch
    %30 = sbr.rel (0) target = $region33
  $region32: #{forward_extract_roioutput.1} parent=0 // pred_region
    _
  $region33: #{forward_extract_roioutput.1} parent=0 // pred_fallthru
    _
  // Predicated region
  $region34: #{forward_extract_roioutput.1} parent=0 // pred_check
    _
  $region35: #{forward_extract_roioutput.1} parent=0 // pred_check_branch
    %32 = sbr.rel (0) target = $region37
  $region36: #{forward_extract_roioutput.1} parent=0 // pred_region
    _
  $region37: #{forward_extract_roioutput.1} parent=0 // pred_fallthru
    _
  // Predicated region
  $region38: #{forward_extract_roioutput.1} parent=0 // pred_check
    _
  $region39: #{forward_extract_roioutput.1} parent=0 // pred_check_branch
    %34 = sbr.rel (0) target = $region41
  $region40: #{forward_extract_roioutput.1} parent=0 // pred_region
    _
  $region41: #{forward_extract_roioutput.1} parent=0 // pred_fallthru
    _
  %v36 = vld [vmem:[%s0] sm:$0xff]
  %v37 = vld [vmem:[%s0 + $0x8] sm:$0xff]
  %v38 = vld [vmem:[%s0 + $0x10] sm:$0xff]
  %v39 = vld [vmem:[%s0 + $0x18] sm:$0xff]
  %v40 = vld [vmem:[%s0 + $0x20] sm:$0xff]
  %v41 = vld [vmem:[%s0 + $0x28] sm:$0xff]
  %v42 = vld [vmem:[%s0 + $0x30] sm:$0xff]
  %v43 = vld [vmem:[%s0 + $0x38] sm:$0xff]
  %v44 = vld [vmem:[%s0 + $0x40] sm:$0xff]
  %v45 = vld [vmem:[%s0 + $0x48] sm:$0xff]
  %v46 = vld [vmem:[%s0 + $0x50] sm:$0xff]
  %v47 = vld [vmem:[%s0 + $0x58] sm:$0xff]
  %v48 = vld [vmem:[%s0 + $0x60] sm:$0xff]
  %v49 = vld [vmem:[%s0 + $0x68] sm:$0xff]
  %v50 = vld [vmem:[%s0 + $0x70] sm:$0xff]
  %v51 = vld [vmem:[%s0 + $0x78] sm:$0xff]
  %v52 = vld [vmem:[%s0 + $0x80] sm:$0xff]
  %v53 = vld [vmem:[%s0 + $0x88] sm:$0xff]
  %v54 = vld [vmem:[%s0 + $0x90] sm:$0xff]
  %v55 = vld [vmem:[%s0 + $0x98] sm:$0xff]
  %v56 = vld [vmem:[%s0 + $0xa0] sm:$0xff]
  %v57 = vld [vmem:[%s0 + $0xa8] sm:$0xff]
  %v58 = vld [vmem:[%s0 + $0xb0] sm:$0xff]
  %v59 = vld [vmem:[%s0 + $0xb8] sm:$0xff]
  %v60 = vld [vmem:[%s0 + $0xc0] sm:$0xff]
  %v61 = vld [vmem:[%s0 + $0xc8] sm:$0xff]
  %v62 = vld [vmem:[%s0 + $0xd0] sm:$0xff]
  %v63 = vld [vmem:[%s0 + $0xd8] sm:$0xff]
  %v64 = vld [vmem:[%s0 + $0xe0] sm:$0xff]
  %v65 = vld [vmem:[%s0 + $0xe8] sm:$0xff]
  %v66 = vld [vmem:[%s0 + $0xf0] sm:$0xff]
  %v67 = vld [vmem:[%s0 + $0xf8] sm:$0xff]
  %v68 = vld [vmem:[%s0 + $0x100] sm:$0xff]
  %v69 = vld [vmem:[%s0 + $0x108] sm:$0xff]
  %v70 = vld [vmem:[%s0 + $0x110] sm:$0xff]
  %v71 = vld [vmem:[%s0 + $0x118] sm:$0xff]
  %v72 = vld [vmem:[%s0 + $0x120] sm:$0xff]
  %v73 = vld [vmem:[%s0 + $0x128] sm:$0xff]
  %v74 = vld [vmem:[%s0 + $0x130] sm:$0xff]
  %v75 = vld [vmem:[%s0 + $0x138] sm:$0xff]
  %v76 = vld [vmem:[%s0 + $0x140] sm:$0xff]
  %v77 = vld [vmem:[%s0 + $0x148] sm:$0xff]
  %v78 = vld [vmem:[%s0 + $0x150] sm:$0xff]
  %v79 = vld [vmem:[%s0 + $0x158] sm:$0xff]
  %v80 = vld [vmem:[%s0 + $0x160] sm:$0xff]
  %v81 = vld [vmem:[%s0 + $0x168] sm:$0xff]
  %v82 = vld [vmem:[%s0 + $0x170] sm:$0xff]
  %v83 = vld [vmem:[%s0 + $0x178] sm:$0xff]
  %v84 = vld [vmem:[%s0 + $0x180] sm:$0xff]
  %v85 = vld [vmem:[%s0 + $0x188] sm:$0xff]
  %v86 = vld [vmem:[%s0 + $0x190] sm:$0xff]
  %v87 = vld [vmem:[%s0 + $0x198] sm:$0xff]
  %v88 = vld [vmem:[%s0 + $0x1a0] sm:$0xff]
  %v89 = vld [vmem:[%s0 + $0x1a8] sm:$0xff]
  %v90 = vld [vmem:[%s0 + $0x1b0] sm:$0xff]
  %v91 = vld [vmem:[%s0 + $0x1b8] sm:$0xff]
  %v92 = vld [vmem:[%s0 + $0x1c0] sm:$0xff]
  %v93 = vld [vmem:[%s0 + $0x1c8] sm:$0xff]
  %v94 = vld [vmem:[%s0 + $0x1d0] sm:$0xff]
  %v95 = vld [vmem:[%s0 + $0x1d8] sm:$0xff]
  %v96 = vld [vmem:[%s0 + $0x1e0] sm:$0xff]
  %v97 = vld [vmem:[%s0 + $0x1e8] sm:$0xff]
  %v98 = vld [vmem:[%s0 + $0x1f0] sm:$0xff]
  %v99 = vld [vmem:[%s0 + $0x1f8] sm:$0xff]
  %v100 = vld [vmem:[%s2] sm:$0xf]
  %v101 = vld [vmem:[%s3] sm:$0x1]
  %103 = vset.pattern.permute.xlu0 0
  %104 = vperm.xlu0 %103, %v36
  %v105 = vpop.permute.xlu0 %104
  %108 = vset.pattern.permute.xlu0 0
  %109 = vperm.xlu0 %108, %v37
  %v110 = vpop.permute.xlu0 %109
  %113 = vset.pattern.permute.xlu0 0
  %114 = vperm.xlu0 %113, %v38
  %v115 = vpop.permute.xlu0 %114
  %118 = vset.pattern.permute.xlu0 0
  %119 = vperm.xlu0 %118, %v39
  %v120 = vpop.permute.xlu0 %119
  %123 = vset.pattern.permute.xlu0 0
  %124 = vperm.xlu0 %123, %v40
  %v125 = vpop.permute.xlu0 %124
  %128 = vset.pattern.permute.xlu0 0
  %129 = vperm.xlu0 %128, %v41
  %v130 = vpop.permute.xlu0 %129
  %133 = vset.pattern.permute.xlu0 0
  %134 = vperm.xlu0 %133, %v42
  %v135 = vpop.permute.xlu0 %134
  %138 = vset.pattern.permute.xlu0 0
  %139 = vperm.xlu0 %138, %v43
  %v140 = vpop.permute.xlu0 %139
  %143 = vset.pattern.permute.xlu0 0
  %144 = vperm.xlu0 %143, %v44
  %v145 = vpop.permute.xlu0 %144
  %148 = vset.pattern.permute.xlu0 0
  %149 = vperm.xlu0 %148, %v45
  %v150 = vpop.permute.xlu0 %149
  %153 = vset.pattern.permute.xlu0 0
  %154 = vperm.xlu0 %153, %v46
  %v155 = vpop.permute.xlu0 %154
  %158 = vset.pattern.permute.xlu0 0
  %159 = vperm.xlu0 %158, %v47
  %v160 = vpop.permute.xlu0 %159
  %163 = vset.pattern.permute.xlu0 0
  %164 = vperm.xlu0 %163, %v48
  %v165 = vpop.permute.xlu0 %164
  %168 = vset.pattern.permute.xlu0 0
  %169 = vperm.xlu0 %168, %v49
  %v170 = vpop.permute.xlu0 %169
  %173 = vset.pattern.permute.xlu0 0
  %174 = vperm.xlu0 %173, %v50
  %v175 = vpop.permute.xlu0 %174
  %178 = vset.pattern.permute.xlu0 0
  %179 = vperm.xlu0 %178, %v51
  %v180 = vpop.permute.xlu0 %179
  %183 = vset.pattern.permute.xlu0 0
  %184 = vperm.xlu0 %183, %v52
  %v185 = vpop.permute.xlu0 %184
  %188 = vset.pattern.permute.xlu0 0
  %189 = vperm.xlu0 %188, %v53
  %v190 = vpop.permute.xlu0 %189
  %193 = vset.pattern.permute.xlu0 0
  %194 = vperm.xlu0 %193, %v54
  %v195 = vpop.permute.xlu0 %194
  %198 = vset.pattern.permute.xlu0 0
  %199 = vperm.xlu0 %198, %v55
  %v200 = vpop.permute.xlu0 %199
  %203 = vset.pattern.permute.xlu0 0
  %204 = vperm.xlu0 %203, %v56
  %v205 = vpop.permute.xlu0 %204
  %208 = vset.pattern.permute.xlu0 0
  %209 = vperm.xlu0 %208, %v57
  %v210 = vpop.permute.xlu0 %209
  %213 = vset.pattern.permute.xlu0 0
  %214 = vperm.xlu0 %213, %v58
  %v215 = vpop.permute.xlu0 %214
  %218 = vset.pattern.permute.xlu0 0
  %219 = vperm.xlu0 %218, %v59
  %v220 = vpop.permute.xlu0 %219
  %223 = vset.pattern.permute.xlu0 0
  %224 = vperm.xlu0 %223, %v60
  %v225 = vpop.permute.xlu0 %224
  %228 = vset.pattern.permute.xlu0 0
  %229 = vperm.xlu0 %228, %v61
  %v230 = vpop.permute.xlu0 %229
  %233 = vset.pattern.permute.xlu0 0
  %234 = vperm.xlu0 %233, %v62
  %v235 = vpop.permute.xlu0 %234
  %238 = vset.pattern.permute.xlu0 0
  %239 = vperm.xlu0 %238, %v63
  %v240 = vpop.permute.xlu0 %239
  %243 = vset.pattern.permute.xlu0 0
  %244 = vperm.xlu0 %243, %v64
  %v245 = vpop.permute.xlu0 %244
  %248 = vset.pattern.permute.xlu0 0
  %249 = vperm.xlu0 %248, %v65
  %v250 = vpop.permute.xlu0 %249
  %253 = vset.pattern.permute.xlu0 0
  %254 = vperm.xlu0 %253, %v66
  %v255 = vpop.permute.xlu0 %254
  %258 = vset.pattern.permute.xlu0 0
  %259 = vperm.xlu0 %258, %v67
  %v260 = vpop.permute.xlu0 %259
  %263 = vset.pattern.permute.xlu0 0
  %264 = vperm.xlu0 %263, %v68
  %v265 = vpop.permute.xlu0 %264
  %268 = vset.pattern.permute.xlu0 0
  %269 = vperm.xlu0 %268, %v69
  %v270 = vpop.permute.xlu0 %269
  %273 = vset.pattern.permute.xlu0 0
  %274 = vperm.xlu0 %273, %v70
  %v275 = vpop.permute.xlu0 %274
  %278 = vset.pattern.permute.xlu0 0
  %279 = vperm.xlu0 %278, %v71
  %v280 = vpop.permute.xlu0 %279
  %283 = vset.pattern.permute.xlu0 0
  %284 = vperm.xlu0 %283, %v72
  %v285 = vpop.permute.xlu0 %284
  %288 = vset.pattern.permute.xlu0 0
  %289 = vperm.xlu0 %288, %v73
  %v290 = vpop.permute.xlu0 %289
  %293 = vset.pattern.permute.xlu0 0
  %294 = vperm.xlu0 %293, %v74
  %v295 = vpop.permute.xlu0 %294
  %298 = vset.pattern.permute.xlu0 0
  %299 = vperm.xlu0 %298, %v75
  %v300 = vpop.permute.xlu0 %299
  %303 = vset.pattern.permute.xlu0 0
  %304 = vperm.xlu0 %303, %v76
  %v305 = vpop.permute.xlu0 %304
  %308 = vset.pattern.permute.xlu0 0
  %309 = vperm.xlu0 %308, %v77
  %v310 = vpop.permute.xlu0 %309
  %313 = vset.pattern.permute.xlu0 0
  %314 = vperm.xlu0 %313, %v78
  %v315 = vpop.permute.xlu0 %314
  %318 = vset.pattern.permute.xlu0 0
  %319 = vperm.xlu0 %318, %v79
  %v320 = vpop.permute.xlu0 %319
  %323 = vset.pattern.permute.xlu0 0
  %324 = vperm.xlu0 %323, %v80
  %v325 = vpop.permute.xlu0 %324
  %328 = vset.pattern.permute.xlu0 0
  %329 = vperm.xlu0 %328, %v81
  %v330 = vpop.permute.xlu0 %329
  %333 = vset.pattern.permute.xlu0 0
  %334 = vperm.xlu0 %333, %v82
  %v335 = vpop.permute.xlu0 %334
  %338 = vset.pattern.permute.xlu0 0
  %339 = vperm.xlu0 %338, %v83
  %v340 = vpop.permute.xlu0 %339
  %343 = vset.pattern.permute.xlu0 0
  %344 = vperm.xlu0 %343, %v84
  %v345 = vpop.permute.xlu0 %344
  %348 = vset.pattern.permute.xlu0 0
  %349 = vperm.xlu0 %348, %v85
  %v350 = vpop.permute.xlu0 %349
  %353 = vset.pattern.permute.xlu0 0
  %354 = vperm.xlu0 %353, %v86
  %v355 = vpop.permute.xlu0 %354
  %358 = vset.pattern.permute.xlu0 0
  %359 = vperm.xlu0 %358, %v87
  %v360 = vpop.permute.xlu0 %359
  %363 = vset.pattern.permute.xlu0 0
  %364 = vperm.xlu0 %363, %v88
  %v365 = vpop.permute.xlu0 %364
  %368 = vset.pattern.permute.xlu0 0
  %369 = vperm.xlu0 %368, %v89
  %v370 = vpop.permute.xlu0 %369
  %373 = vset.pattern.permute.xlu0 0
  %374 = vperm.xlu0 %373, %v90
  %v375 = vpop.permute.xlu0 %374
  %378 = vset.pattern.permute.xlu0 0
  %379 = vperm.xlu0 %378, %v91
  %v380 = vpop.permute.xlu0 %379
  %383 = vset.pattern.permute.xlu0 0
  %384 = vperm.xlu0 %383, %v92
  %v385 = vpop.permute.xlu0 %384
  %388 = vset.pattern.permute.xlu0 0
  %389 = vperm.xlu0 %388, %v93
  %v390 = vpop.permute.xlu0 %389
  %393 = vset.pattern.permute.xlu0 0
  %394 = vperm.xlu0 %393, %v94
  %v395 = vpop.permute.xlu0 %394
  %398 = vset.pattern.permute.xlu0 0
  %399 = vperm.xlu0 %398, %v95
  %v400 = vpop.permute.xlu0 %399
  %403 = vset.pattern.permute.xlu0 0
  %404 = vperm.xlu0 %403, %v96
  %v405 = vpop.permute.xlu0 %404
  %408 = vset.pattern.permute.xlu0 0
  %409 = vperm.xlu0 %408, %v97
  %v410 = vpop.permute.xlu0 %409
  %413 = vset.pattern.permute.xlu0 0
  %414 = vperm.xlu0 %413, %v98
  %v415 = vpop.permute.xlu0 %414
  %418 = vset.pattern.permute.xlu0 0
  %419 = vperm.xlu0 %418, %v99
  %v420 = vpop.permute.xlu0 %419
  %v422 = vperm.slane %v100, 0
  %v423 = vmul.f32 %v105, %v422
  %v424 = vmul.f32 %v110, %v422
  %v425 = vmul.f32 %v115, %v422
  %v426 = vmul.f32 %v120, %v422
  %v427 = vmul.f32 %v125, %v422
  %v428 = vmul.f32 %v130, %v422
  %v429 = vmul.f32 %v135, %v422
  %v430 = vmul.f32 %v140, %v422
  %v431 = vmul.f32 %v145, %v422
  %v432 = vmul.f32 %v150, %v422
  %v433 = vmul.f32 %v155, %v422
  %v434 = vmul.f32 %v160, %v422
  %v435 = vmul.f32 %v165, %v422
  %v436 = vmul.f32 %v170, %v422
  %v437 = vmul.f32 %v175, %v422
  %v438 = vmul.f32 %v180, %v422
  %v439 = vmul.f32 %v185, %v422
  %v440 = vmul.f32 %v190, %v422
  %v441 = vmul.f32 %v195, %v422
  %v442 = vmul.f32 %v200, %v422
  %v443 = vmul.f32 %v205, %v422
  %v444 = vmul.f32 %v210, %v422
  %v445 = vmul.f32 %v215, %v422
  %v446 = vmul.f32 %v220, %v422
  %v447 = vmul.f32 %v225, %v422
  %v448 = vmul.f32 %v230, %v422
  %v449 = vmul.f32 %v235, %v422
  %v450 = vmul.f32 %v240, %v422
  %v451 = vmul.f32 %v245, %v422
  %v452 = vmul.f32 %v250, %v422
  %v453 = vmul.f32 %v255, %v422
  %v454 = vmul.f32 %v260, %v422
  %v455 = vmul.f32 %v265, %v422
  %v456 = vmul.f32 %v270, %v422
  %v457 = vmul.f32 %v275, %v422
  %v458 = vmul.f32 %v280, %v422
  %v459 = vmul.f32 %v285, %v422
  %v460 = vmul.f32 %v290, %v422
  %v461 = vmul.f32 %v295, %v422
  %v462 = vmul.f32 %v300, %v422
  %v463 = vmul.f32 %v305, %v422
  %v464 = vmul.f32 %v310, %v422
  %v465 = vmul.f32 %v315, %v422
  %v466 = vmul.f32 %v320, %v422
  %v467 = vmul.f32 %v325, %v422
  %v468 = vmul.f32 %v330, %v422
  %v469 = vmul.f32 %v335, %v422
  %v470 = vmul.f32 %v340, %v422
  %v471 = vmul.f32 %v345, %v422
  %v472 = vmul.f32 %v350, %v422
  %v473 = vmul.f32 %v355, %v422
  %v474 = vmul.f32 %v360, %v422
  %v475 = vmul.f32 %v365, %v422
  %v476 = vmul.f32 %v370, %v422
  %v477 = vmul.f32 %v375, %v422
  %v478 = vmul.f32 %v380, %v422
  %v479 = vmul.f32 %v385, %v422
  %v480 = vmul.f32 %v390, %v422
  %v481 = vmul.f32 %v395, %v422
  %v482 = vmul.f32 %v400, %v422
  %v483 = vmul.f32 %v405, %v422
  %v484 = vmul.f32 %v410, %v422
  %v485 = vmul.f32 %v415, %v422
  %v486 = vmul.f32 %v420, %v422
  %v488 = vperm.slane %v101, 0
  %v490 = vadd.f32 %v488, %v423
  %v491 = vadd.f32 %v488, %v424
  %v492 = vadd.f32 %v488, %v425
  %v493 = vadd.f32 %v488, %v426
  %v494 = vadd.f32 %v488, %v427
  %v495 = vadd.f32 %v488, %v428
  %v496 = vadd.f32 %v488, %v429
  %v497 = vadd.f32 %v488, %v430
  %v498 = vadd.f32 %v488, %v431
  %v499 = vadd.f32 %v488, %v432
  %v500 = vadd.f32 %v488, %v433
  %v501 = vadd.f32 %v488, %v434
  %v502 = vadd.f32 %v488, %v435
  %v503 = vadd.f32 %v488, %v436
  %v504 = vadd.f32 %v488, %v437
  %v505 = vadd.f32 %v488, %v438
  %v506 = vadd.f32 %v488, %v439
  %v507 = vadd.f32 %v488, %v440
  %v508 = vadd.f32 %v488, %v441
  %v509 = vadd.f32 %v488, %v442
  %v510 = vadd.f32 %v488, %v443
  %v511 = vadd.f32 %v488, %v444
  %v512 = vadd.f32 %v488, %v445
  %v513 = vadd.f32 %v488, %v446
  %v514 = vadd.f32 %v488, %v447
  %v515 = vadd.f32 %v488, %v448
  %v516 = vadd.f32 %v488, %v449
  %v517 = vadd.f32 %v488, %v450
  %v518 = vadd.f32 %v488, %v451
  %v519 = vadd.f32 %v488, %v452
  %v520 = vadd.f32 %v488, %v453
  %v521 = vadd.f32 %v488, %v454
  %v522 = vadd.f32 %v488, %v455
  %v523 = vadd.f32 %v488, %v456
  %v524 = vadd.f32 %v488, %v457
  %v525 = vadd.f32 %v488, %v458
  %v526 = vadd.f32 %v488, %v459
  %v527 = vadd.f32 %v488, %v460
  %v528 = vadd.f32 %v488, %v461
  %v529 = vadd.f32 %v488, %v462
  %v530 = vadd.f32 %v488, %v463
  %v531 = vadd.f32 %v488, %v464
  %v532 = vadd.f32 %v488, %v465
  %v533 = vadd.f32 %v488, %v466
  %v534 = vadd.f32 %v488, %v467
  %v535 = vadd.f32 %v488, %v468
  %v536 = vadd.f32 %v488, %v469
  %v537 = vadd.f32 %v488, %v470
  %v538 = vadd.f32 %v488, %v471
  %v539 = vadd.f32 %v488, %v472
  %v540 = vadd.f32 %v488, %v473
  %v541 = vadd.f32 %v488, %v474
  %v542 = vadd.f32 %v488, %v475
  %v543 = vadd.f32 %v488, %v476
  %v544 = vadd.f32 %v488, %v477
  %v545 = vadd.f32 %v488, %v478
  %v546 = vadd.f32 %v488, %v479
  %v547 = vadd.f32 %v488, %v480
  %v548 = vadd.f32 %v488, %v481
  %v549 = vadd.f32 %v488, %v482
  %v550 = vadd.f32 %v488, %v483
  %v551 = vadd.f32 %v488, %v484
  %v552 = vadd.f32 %v488, %v485
  %v553 = vadd.f32 %v488, %v486
  %554 = vset.pattern.permute.xlu0 1
  %555 = vperm.xlu0 %554, %v36
  %v556 = vpop.permute.xlu0 %555
  %558 = vset.pattern.permute.xlu0 1
  %559 = vperm.xlu0 %558, %v37
  %v560 = vpop.permute.xlu0 %559
  %562 = vset.pattern.permute.xlu0 1
  %563 = vperm.xlu0 %562, %v38
  %v564 = vpop.permute.xlu0 %563
  %566 = vset.pattern.permute.xlu0 1
  %567 = vperm.xlu0 %566, %v39
  %v568 = vpop.permute.xlu0 %567
  %570 = vset.pattern.permute.xlu0 1
  %571 = vperm.xlu0 %570, %v40
  %v572 = vpop.permute.xlu0 %571
  %574 = vset.pattern.permute.xlu0 1
  %575 = vperm.xlu0 %574, %v41
  %v576 = vpop.permute.xlu0 %575
  %578 = vset.pattern.permute.xlu0 1
  %579 = vperm.xlu0 %578, %v42
  %v580 = vpop.permute.xlu0 %579
  %582 = vset.pattern.permute.xlu0 1
  %583 = vperm.xlu0 %582, %v43
  %v584 = vpop.permute.xlu0 %583
  %586 = vset.pattern.permute.xlu0 1
  %587 = vperm.xlu0 %586, %v44
  %v588 = vpop.permute.xlu0 %587
  %590 = vset.pattern.permute.xlu0 1
  %591 = vperm.xlu0 %590, %v45
  %v592 = vpop.permute.xlu0 %591
  %594 = vset.pattern.permute.xlu0 1
  %595 = vperm.xlu0 %594, %v46
  %v596 = vpop.permute.xlu0 %595
  %598 = vset.pattern.permute.xlu0 1
  %599 = vperm.xlu0 %598, %v47
  %v600 = vpop.permute.xlu0 %599
  %602 = vset.pattern.permute.xlu0 1
  %603 = vperm.xlu0 %602, %v48
  %v604 = vpop.permute.xlu0 %603
  %606 = vset.pattern.permute.xlu0 1
  %607 = vperm.xlu0 %606, %v49
  %v608 = vpop.permute.xlu0 %607
  %610 = vset.pattern.permute.xlu0 1
  %611 = vperm.xlu0 %610, %v50
  %v612 = vpop.permute.xlu0 %611
  %614 = vset.pattern.permute.xlu0 1
  %615 = vperm.xlu0 %614, %v51
  %v616 = vpop.permute.xlu0 %615
  %618 = vset.pattern.permute.xlu0 1
  %619 = vperm.xlu0 %618, %v52
  %v620 = vpop.permute.xlu0 %619
  %622 = vset.pattern.permute.xlu0 1
  %623 = vperm.xlu0 %622, %v53
  %v624 = vpop.permute.xlu0 %623
  %626 = vset.pattern.permute.xlu0 1
  %627 = vperm.xlu0 %626, %v54
  %v628 = vpop.permute.xlu0 %627
  %630 = vset.pattern.permute.xlu0 1
  %631 = vperm.xlu0 %630, %v55
  %v632 = vpop.permute.xlu0 %631
  %634 = vset.pattern.permute.xlu0 1
  %635 = vperm.xlu0 %634, %v56
  %v636 = vpop.permute.xlu0 %635
  %638 = vset.pattern.permute.xlu0 1
  %639 = vperm.xlu0 %638, %v57
  %v640 = vpop.permute.xlu0 %639
  %642 = vset.pattern.permute.xlu0 1
  %643 = vperm.xlu0 %642, %v58
  %v644 = vpop.permute.xlu0 %643
  %646 = vset.pattern.permute.xlu0 1
  %647 = vperm.xlu0 %646, %v59
  %v648 = vpop.permute.xlu0 %647
  %650 = vset.pattern.permute.xlu0 1
  %651 = vperm.xlu0 %650, %v60
  %v652 = vpop.permute.xlu0 %651
  %654 = vset.pattern.permute.xlu0 1
  %655 = vperm.xlu0 %654, %v61
  %v656 = vpop.permute.xlu0 %655
  %658 = vset.pattern.permute.xlu0 1
  %659 = vperm.xlu0 %658, %v62
  %v660 = vpop.permute.xlu0 %659
  %662 = vset.pattern.permute.xlu0 1
  %663 = vperm.xlu0 %662, %v63
  %v664 = vpop.permute.xlu0 %663
  %666 = vset.pattern.permute.xlu0 1
  %667 = vperm.xlu0 %666, %v64
  %v668 = vpop.permute.xlu0 %667
  %670 = vset.pattern.permute.xlu0 1
  %671 = vperm.xlu0 %670, %v65
  %v672 = vpop.permute.xlu0 %671
  %674 = vset.pattern.permute.xlu0 1
  %675 = vperm.xlu0 %674, %v66
  %v676 = vpop.permute.xlu0 %675
  %678 = vset.pattern.permute.xlu0 1
  %679 = vperm.xlu0 %678, %v67
  %v680 = vpop.permute.xlu0 %679
  %682 = vset.pattern.permute.xlu0 1
  %683 = vperm.xlu0 %682, %v68
  %v684 = vpop.permute.xlu0 %683
  %686 = vset.pattern.permute.xlu0 1
  %687 = vperm.xlu0 %686, %v69
  %v688 = vpop.permute.xlu0 %687
  %690 = vset.pattern.permute.xlu0 1
  %691 = vperm.xlu0 %690, %v70
  %v692 = vpop.permute.xlu0 %691
  %694 = vset.pattern.permute.xlu0 1
  %695 = vperm.xlu0 %694, %v71
  %v696 = vpop.permute.xlu0 %695
  %698 = vset.pattern.permute.xlu0 1
  %699 = vperm.xlu0 %698, %v72
  %v700 = vpop.permute.xlu0 %699
  %702 = vset.pattern.permute.xlu0 1
  %703 = vperm.xlu0 %702, %v73
  %v704 = vpop.permute.xlu0 %703
  %706 = vset.pattern.permute.xlu0 1
  %707 = vperm.xlu0 %706, %v74
  %v708 = vpop.permute.xlu0 %707
  %710 = vset.pattern.permute.xlu0 1
  %711 = vperm.xlu0 %710, %v75
  %v712 = vpop.permute.xlu0 %711
  %714 = vset.pattern.permute.xlu0 1
  %715 = vperm.xlu0 %714, %v76
  %v716 = vpop.permute.xlu0 %715
  %718 = vset.pattern.permute.xlu0 1
  %719 = vperm.xlu0 %718, %v77
  %v720 = vpop.permute.xlu0 %719
  %722 = vset.pattern.permute.xlu0 1
  %723 = vperm.xlu0 %722, %v78
  %v724 = vpop.permute.xlu0 %723
  %726 = vset.pattern.permute.xlu0 1
  %727 = vperm.xlu0 %726, %v79
  %v728 = vpop.permute.xlu0 %727
  %730 = vset.pattern.permute.xlu0 1
  %731 = vperm.xlu0 %730, %v80
  %v732 = vpop.permute.xlu0 %731
  %734 = vset.pattern.permute.xlu0 1
  %735 = vperm.xlu0 %734, %v81
  %v736 = vpop.permute.xlu0 %735
  %738 = vset.pattern.permute.xlu0 1
  %739 = vperm.xlu0 %738, %v82
  %v740 = vpop.permute.xlu0 %739
  %742 = vset.pattern.permute.xlu0 1
  %743 = vperm.xlu0 %742, %v83
  %v744 = vpop.permute.xlu0 %743
  %746 = vset.pattern.permute.xlu0 1
  %747 = vperm.xlu0 %746, %v84
  %v748 = vpop.permute.xlu0 %747
  %750 = vset.pattern.permute.xlu0 1
  %751 = vperm.xlu0 %750, %v85
  %v752 = vpop.permute.xlu0 %751
  %754 = vset.pattern.permute.xlu0 1
  %755 = vperm.xlu0 %754, %v86
  %v756 = vpop.permute.xlu0 %755
  %758 = vset.pattern.permute.xlu0 1
  %759 = vperm.xlu0 %758, %v87
  %v760 = vpop.permute.xlu0 %759
  %762 = vset.pattern.permute.xlu0 1
  %763 = vperm.xlu0 %762, %v88
  %v764 = vpop.permute.xlu0 %763
  %766 = vset.pattern.permute.xlu0 1
  %767 = vperm.xlu0 %766, %v89
  %v768 = vpop.permute.xlu0 %767
  %770 = vset.pattern.permute.xlu0 1
  %771 = vperm.xlu0 %770, %v90
  %v772 = vpop.permute.xlu0 %771
  %774 = vset.pattern.permute.xlu0 1
  %775 = vperm.xlu0 %774, %v91
  %v776 = vpop.permute.xlu0 %775
  %778 = vset.pattern.permute.xlu0 1
  %779 = vperm.xlu0 %778, %v92
  %v780 = vpop.permute.xlu0 %779
  %782 = vset.pattern.permute.xlu0 1
  %783 = vperm.xlu0 %782, %v93
  %v784 = vpop.permute.xlu0 %783
  %786 = vset.pattern.permute.xlu0 1
  %787 = vperm.xlu0 %786, %v94
  %v788 = vpop.permute.xlu0 %787
  %790 = vset.pattern.permute.xlu0 1
  %791 = vperm.xlu0 %790, %v95
  %v792 = vpop.permute.xlu0 %791
  %794 = vset.pattern.permute.xlu0 1
  %795 = vperm.xlu0 %794, %v96
  %v796 = vpop.permute.xlu0 %795
  %798 = vset.pattern.permute.xlu0 1
  %799 = vperm.xlu0 %798, %v97
  %v800 = vpop.permute.xlu0 %799
  %802 = vset.pattern.permute.xlu0 1
  %803 = vperm.xlu0 %802, %v98
  %v804 = vpop.permute.xlu0 %803
  %806 = vset.pattern.permute.xlu0 1
  %807 = vperm.xlu0 %806, %v99
  %v808 = vpop.permute.xlu0 %807
  %v810 = vperm.slane %v100, 1
  %v811 = vmul.f32 %v556, %v810
  %v812 = vmul.f32 %v560, %v810
  %v813 = vmul.f32 %v564, %v810
  %v814 = vmul.f32 %v568, %v810
  %v815 = vmul.f32 %v572, %v810
  %v816 = vmul.f32 %v576, %v810
  %v817 = vmul.f32 %v580, %v810
  %v818 = vmul.f32 %v584, %v810
  %v819 = vmul.f32 %v588, %v810
  %v820 = vmul.f32 %v592, %v810
  %v821 = vmul.f32 %v596, %v810
  %v822 = vmul.f32 %v600, %v810
  %v823 = vmul.f32 %v604, %v810
  %v824 = vmul.f32 %v608, %v810
  %v825 = vmul.f32 %v612, %v810
  %v826 = vmul.f32 %v616, %v810
  %v827 = vmul.f32 %v620, %v810
  %v828 = vmul.f32 %v624, %v810
  %v829 = vmul.f32 %v628, %v810
  %v830 = vmul.f32 %v632, %v810
  %v831 = vmul.f32 %v636, %v810
  %v832 = vmul.f32 %v640, %v810
  %v833 = vmul.f32 %v644, %v810
  %v834 = vmul.f32 %v648, %v810
  %v835 = vmul.f32 %v652, %v810
  %v836 = vmul.f32 %v656, %v810
  %v837 = vmul.f32 %v660, %v810
  %v838 = vmul.f32 %v664, %v810
  %v839 = vmul.f32 %v668, %v810
  %v840 = vmul.f32 %v672, %v810
  %v841 = vmul.f32 %v676, %v810
  %v842 = vmul.f32 %v680, %v810
  %v843 = vmul.f32 %v684, %v810
  %v844 = vmul.f32 %v688, %v810
  %v845 = vmul.f32 %v692, %v810
  %v846 = vmul.f32 %v696, %v810
  %v847 = vmul.f32 %v700, %v810
  %v848 = vmul.f32 %v704, %v810
  %v849 = vmul.f32 %v708, %v810
  %v850 = vmul.f32 %v712, %v810
  %v851 = vmul.f32 %v716, %v810
  %v852 = vmul.f32 %v720, %v810
  %v853 = vmul.f32 %v724, %v810
  %v854 = vmul.f32 %v728, %v810
  %v855 = vmul.f32 %v732, %v810
  %v856 = vmul.f32 %v736, %v810
  %v857 = vmul.f32 %v740, %v810
  %v858 = vmul.f32 %v744, %v810
  %v859 = vmul.f32 %v748, %v810
  %v860 = vmul.f32 %v752, %v810
  %v861 = vmul.f32 %v756, %v810
  %v862 = vmul.f32 %v760, %v810
  %v863 = vmul.f32 %v764, %v810
  %v864 = vmul.f32 %v768, %v810
  %v865 = vmul.f32 %v772, %v810
  %v866 = vmul.f32 %v776, %v810
  %v867 = vmul.f32 %v780, %v810
  %v868 = vmul.f32 %v784, %v810
  %v869 = vmul.f32 %v788, %v810
  %v870 = vmul.f32 %v792, %v810
  %v871 = vmul.f32 %v796, %v810
  %v872 = vmul.f32 %v800, %v810
  %v873 = vmul.f32 %v804, %v810
  %v874 = vmul.f32 %v808, %v810
  %v875 = vadd.f32 %v490, %v811
  %v876 = vadd.f32 %v491, %v812
  %v877 = vadd.f32 %v492, %v813
  %v878 = vadd.f32 %v493, %v814
  %v879 = vadd.f32 %v494, %v815
  %v880 = vadd.f32 %v495, %v816
  %v881 = vadd.f32 %v496, %v817
  %v882 = vadd.f32 %v497, %v818
  %v883 = vadd.f32 %v498, %v819
  %v884 = vadd.f32 %v499, %v820
  %v885 = vadd.f32 %v500, %v821
  %v886 = vadd.f32 %v501, %v822
  %v887 = vadd.f32 %v502, %v823
  %v888 = vadd.f32 %v503, %v824
  %v889 = vadd.f32 %v504, %v825
  %v890 = vadd.f32 %v505, %v826
  %v891 = vadd.f32 %v506, %v827
  %v892 = vadd.f32 %v507, %v828
  %v893 = vadd.f32 %v508, %v829
  %v894 = vadd.f32 %v509, %v830
  %v895 = vadd.f32 %v510, %v831
  %v896 = vadd.f32 %v511, %v832
  %v897 = vadd.f32 %v512, %v833
  %v898 = vadd.f32 %v513, %v834
  %v899 = vadd.f32 %v514, %v835
  %v900 = vadd.f32 %v515, %v836
  %v901 = vadd.f32 %v516, %v837
  %v902 = vadd.f32 %v517, %v838
  %v903 = vadd.f32 %v518, %v839
  %v904 = vadd.f32 %v519, %v840
  %v905 = vadd.f32 %v520, %v841
  %v906 = vadd.f32 %v521, %v842
  %v907 = vadd.f32 %v522, %v843
  %v908 = vadd.f32 %v523, %v844
  %v909 = vadd.f32 %v524, %v845
  %v910 = vadd.f32 %v525, %v846
  %v911 = vadd.f32 %v526, %v847
  %v912 = vadd.f32 %v527, %v848
  %v913 = vadd.f32 %v528, %v849
  %v914 = vadd.f32 %v529, %v850
  %v915 = vadd.f32 %v530, %v851
  %v916 = vadd.f32 %v531, %v852
  %v917 = vadd.f32 %v532, %v853
  %v918 = vadd.f32 %v533, %v854
  %v919 = vadd.f32 %v534, %v855
  %v920 = vadd.f32 %v535, %v856
  %v921 = vadd.f32 %v536, %v857
  %v922 = vadd.f32 %v537, %v858
  %v923 = vadd.f32 %v538, %v859
  %v924 = vadd.f32 %v539, %v860
  %v925 = vadd.f32 %v540, %v861
  %v926 = vadd.f32 %v541, %v862
  %v927 = vadd.f32 %v542, %v863
  %v928 = vadd.f32 %v543, %v864
  %v929 = vadd.f32 %v544, %v865
  %v930 = vadd.f32 %v545, %v866
  %v931 = vadd.f32 %v546, %v867
  %v932 = vadd.f32 %v547, %v868
  %v933 = vadd.f32 %v548, %v869
  %v934 = vadd.f32 %v549, %v870
  %v935 = vadd.f32 %v550, %v871
  %v936 = vadd.f32 %v551, %v872
  %v937 = vadd.f32 %v552, %v873
  %v938 = vadd.f32 %v553, %v874
  %939 = vset.pattern.permute.xlu0 2
  %940 = vperm.xlu0 %939, %v36
  %v941 = vpop.permute.xlu0 %940
  %943 = vset.pattern.permute.xlu0 2
  %944 = vperm.xlu0 %943, %v37
  %v945 = vpop.permute.xlu0 %944
  %947 = vset.pattern.permute.xlu0 2
  %948 = vperm.xlu0 %947, %v38
  %v949 = vpop.permute.xlu0 %948
  %951 = vset.pattern.permute.xlu0 2
  %952 = vperm.xlu0 %951, %v39
  %v953 = vpop.permute.xlu0 %952
  %955 = vset.pattern.permute.xlu0 2
  %956 = vperm.xlu0 %955, %v40
  %v957 = vpop.permute.xlu0 %956
  %959 = vset.pattern.permute.xlu0 2
  %960 = vperm.xlu0 %959, %v41
  %v961 = vpop.permute.xlu0 %960
  %963 = vset.pattern.permute.xlu0 2
  %964 = vperm.xlu0 %963, %v42
  %v965 = vpop.permute.xlu0 %964
  %967 = vset.pattern.permute.xlu0 2
  %968 = vperm.xlu0 %967, %v43
  %v969 = vpop.permute.xlu0 %968
  %971 = vset.pattern.permute.xlu0 2
  %972 = vperm.xlu0 %971, %v44
  %v973 = vpop.permute.xlu0 %972
  %975 = vset.pattern.permute.xlu0 2
  %976 = vperm.xlu0 %975, %v45
  %v977 = vpop.permute.xlu0 %976
  %979 = vset.pattern.permute.xlu0 2
  %980 = vperm.xlu0 %979, %v46
  %v981 = vpop.permute.xlu0 %980
  %983 = vset.pattern.permute.xlu0 2
  %984 = vperm.xlu0 %983, %v47
  %v985 = vpop.permute.xlu0 %984
  %987 = vset.pattern.permute.xlu0 2
  %988 = vperm.xlu0 %987, %v48
  %v989 = vpop.permute.xlu0 %988
  %991 = vset.pattern.permute.xlu0 2
  %992 = vperm.xlu0 %991, %v49
  %v993 = vpop.permute.xlu0 %992
  %995 = vset.pattern.permute.xlu0 2
  %996 = vperm.xlu0 %995, %v50
  %v997 = vpop.permute.xlu0 %996
  %999 = vset.pattern.permute.xlu0 2
  %1000 = vperm.xlu0 %999, %v51
  %v1001 = vpop.permute.xlu0 %1000
  %1003 = vset.pattern.permute.xlu0 2
  %1004 = vperm.xlu0 %1003, %v52
  %v1005 = vpop.permute.xlu0 %1004
  %1007 = vset.pattern.permute.xlu0 2
  %1008 = vperm.xlu0 %1007, %v53
  %v1009 = vpop.permute.xlu0 %1008
  %1011 = vset.pattern.permute.xlu0 2
  %1012 = vperm.xlu0 %1011, %v54
  %v1013 = vpop.permute.xlu0 %1012
  %1015 = vset.pattern.permute.xlu0 2
  %1016 = vperm.xlu0 %1015, %v55
  %v1017 = vpop.permute.xlu0 %1016
  %1019 = vset.pattern.permute.xlu0 2
  %1020 = vperm.xlu0 %1019, %v56
  %v1021 = vpop.permute.xlu0 %1020
  %1023 = vset.pattern.permute.xlu0 2
  %1024 = vperm.xlu0 %1023, %v57
  %v1025 = vpop.permute.xlu0 %1024
  %1027 = vset.pattern.permute.xlu0 2
  %1028 = vperm.xlu0 %1027, %v58
  %v1029 = vpop.permute.xlu0 %1028
  %1031 = vset.pattern.permute.xlu0 2
  %1032 = vperm.xlu0 %1031, %v59
  %v1033 = vpop.permute.xlu0 %1032
  %1035 = vset.pattern.permute.xlu0 2
  %1036 = vperm.xlu0 %1035, %v60
  %v1037 = vpop.permute.xlu0 %1036
  %1039 = vset.pattern.permute.xlu0 2
  %1040 = vperm.xlu0 %1039, %v61
  %v1041 = vpop.permute.xlu0 %1040
  %1043 = vset.pattern.permute.xlu0 2
  %1044 = vperm.xlu0 %1043, %v62
  %v1045 = vpop.permute.xlu0 %1044
  %1047 = vset.pattern.permute.xlu0 2
  %1048 = vperm.xlu0 %1047, %v63
  %v1049 = vpop.permute.xlu0 %1048
  %1051 = vset.pattern.permute.xlu0 2
  %1052 = vperm.xlu0 %1051, %v64
  %v1053 = vpop.permute.xlu0 %1052
  %1055 = vset.pattern.permute.xlu0 2
  %1056 = vperm.xlu0 %1055, %v65
  %v1057 = vpop.permute.xlu0 %1056
  %1059 = vset.pattern.permute.xlu0 2
  %1060 = vperm.xlu0 %1059, %v66
  %v1061 = vpop.permute.xlu0 %1060
  %1063 = vset.pattern.permute.xlu0 2
  %1064 = vperm.xlu0 %1063, %v67
  %v1065 = vpop.permute.xlu0 %1064
  %1067 = vset.pattern.permute.xlu0 2
  %1068 = vperm.xlu0 %1067, %v68
  %v1069 = vpop.permute.xlu0 %1068
  %1071 = vset.pattern.permute.xlu0 2
  %1072 = vperm.xlu0 %1071, %v69
  %v1073 = vpop.permute.xlu0 %1072
  %1075 = vset.pattern.permute.xlu0 2
  %1076 = vperm.xlu0 %1075, %v70
  %v1077 = vpop.permute.xlu0 %1076
  %1079 = vset.pattern.permute.xlu0 2
  %1080 = vperm.xlu0 %1079, %v71
  %v1081 = vpop.permute.xlu0 %1080
  %1083 = vset.pattern.permute.xlu0 2
  %1084 = vperm.xlu0 %1083, %v72
  %v1085 = vpop.permute.xlu0 %1084
  %1087 = vset.pattern.permute.xlu0 2
  %1088 = vperm.xlu0 %1087, %v73
  %v1089 = vpop.permute.xlu0 %1088
  %1091 = vset.pattern.permute.xlu0 2
  %1092 = vperm.xlu0 %1091, %v74
  %v1093 = vpop.permute.xlu0 %1092
  %1095 = vset.pattern.permute.xlu0 2
  %1096 = vperm.xlu0 %1095, %v75
  %v1097 = vpop.permute.xlu0 %1096
  %1099 = vset.pattern.permute.xlu0 2
  %1100 = vperm.xlu0 %1099, %v76
  %v1101 = vpop.permute.xlu0 %1100
  %1103 = vset.pattern.permute.xlu0 2
  %1104 = vperm.xlu0 %1103, %v77
  %v1105 = vpop.permute.xlu0 %1104
  %1107 = vset.pattern.permute.xlu0 2
  %1108 = vperm.xlu0 %1107, %v78
  %v1109 = vpop.permute.xlu0 %1108
  %1111 = vset.pattern.permute.xlu0 2
  %1112 = vperm.xlu0 %1111, %v79
  %v1113 = vpop.permute.xlu0 %1112
  %1115 = vset.pattern.permute.xlu0 2
  %1116 = vperm.xlu0 %1115, %v80
  %v1117 = vpop.permute.xlu0 %1116
  %1119 = vset.pattern.permute.xlu0 2
  %1120 = vperm.xlu0 %1119, %v81
  %v1121 = vpop.permute.xlu0 %1120
  %1123 = vset.pattern.permute.xlu0 2
  %1124 = vperm.xlu0 %1123, %v82
  %v1125 = vpop.permute.xlu0 %1124
  %1127 = vset.pattern.permute.xlu0 2
  %1128 = vperm.xlu0 %1127, %v83
  %v1129 = vpop.permute.xlu0 %1128
  %1131 = vset.pattern.permute.xlu0 2
  %1132 = vperm.xlu0 %1131, %v84
  %v1133 = vpop.permute.xlu0 %1132
  %1135 = vset.pattern.permute.xlu0 2
  %1136 = vperm.xlu0 %1135, %v85
  %v1137 = vpop.permute.xlu0 %1136
  %1139 = vset.pattern.permute.xlu0 2
  %1140 = vperm.xlu0 %1139, %v86
  %v1141 = vpop.permute.xlu0 %1140
  %1143 = vset.pattern.permute.xlu0 2
  %1144 = vperm.xlu0 %1143, %v87
  %v1145 = vpop.permute.xlu0 %1144
  %1147 = vset.pattern.permute.xlu0 2
  %1148 = vperm.xlu0 %1147, %v88
  %v1149 = vpop.permute.xlu0 %1148
  %1151 = vset.pattern.permute.xlu0 2
  %1152 = vperm.xlu0 %1151, %v89
  %v1153 = vpop.permute.xlu0 %1152
  %1155 = vset.pattern.permute.xlu0 2
  %1156 = vperm.xlu0 %1155, %v90
  %v1157 = vpop.permute.xlu0 %1156
  %1159 = vset.pattern.permute.xlu0 2
  %1160 = vperm.xlu0 %1159, %v91
  %v1161 = vpop.permute.xlu0 %1160
  %1163 = vset.pattern.permute.xlu0 2
  %1164 = vperm.xlu0 %1163, %v92
  %v1165 = vpop.permute.xlu0 %1164
  %1167 = vset.pattern.permute.xlu0 2
  %1168 = vperm.xlu0 %1167, %v93
  %v1169 = vpop.permute.xlu0 %1168
  %1171 = vset.pattern.permute.xlu0 2
  %1172 = vperm.xlu0 %1171, %v94
  %v1173 = vpop.permute.xlu0 %1172
  %1175 = vset.pattern.permute.xlu0 2
  %1176 = vperm.xlu0 %1175, %v95
  %v1177 = vpop.permute.xlu0 %1176
  %1179 = vset.pattern.permute.xlu0 2
  %1180 = vperm.xlu0 %1179, %v96
  %v1181 = vpop.permute.xlu0 %1180
  %1183 = vset.pattern.permute.xlu0 2
  %1184 = vperm.xlu0 %1183, %v97
  %v1185 = vpop.permute.xlu0 %1184
  %1187 = vset.pattern.permute.xlu0 2
  %1188 = vperm.xlu0 %1187, %v98
  %v1189 = vpop.permute.xlu0 %1188
  %1191 = vset.pattern.permute.xlu0 2
  %1192 = vperm.xlu0 %1191, %v99
  %v1193 = vpop.permute.xlu0 %1192
  %v1195 = vperm.slane %v100, 2
  %v1196 = vmul.f32 %v941, %v1195
  %v1197 = vmul.f32 %v945, %v1195
  %v1198 = vmul.f32 %v949, %v1195
  %v1199 = vmul.f32 %v953, %v1195
  %v1200 = vmul.f32 %v957, %v1195
  %v1201 = vmul.f32 %v961, %v1195
  %v1202 = vmul.f32 %v965, %v1195
  %v1203 = vmul.f32 %v969, %v1195
  %v1204 = vmul.f32 %v973, %v1195
  %v1205 = vmul.f32 %v977, %v1195
  %v1206 = vmul.f32 %v981, %v1195
  %v1207 = vmul.f32 %v985, %v1195
  %v1208 = vmul.f32 %v989, %v1195
  %v1209 = vmul.f32 %v993, %v1195
  %v1210 = vmul.f32 %v997, %v1195
  %v1211 = vmul.f32 %v1001, %v1195
  %v1212 = vmul.f32 %v1005, %v1195
  %v1213 = vmul.f32 %v1009, %v1195
  %v1214 = vmul.f32 %v1013, %v1195
  %v1215 = vmul.f32 %v1017, %v1195
  %v1216 = vmul.f32 %v1021, %v1195
  %v1217 = vmul.f32 %v1025, %v1195
  %v1218 = vmul.f32 %v1029, %v1195
  %v1219 = vmul.f32 %v1033, %v1195
  %v1220 = vmul.f32 %v1037, %v1195
  %v1221 = vmul.f32 %v1041, %v1195
  %v1222 = vmul.f32 %v1045, %v1195
  %v1223 = vmul.f32 %v1049, %v1195
  %v1224 = vmul.f32 %v1053, %v1195
  %v1225 = vmul.f32 %v1057, %v1195
  %v1226 = vmul.f32 %v1061, %v1195
  %v1227 = vmul.f32 %v1065, %v1195
  %v1228 = vmul.f32 %v1069, %v1195
  %v1229 = vmul.f32 %v1073, %v1195
  %v1230 = vmul.f32 %v1077, %v1195
  %v1231 = vmul.f32 %v1081, %v1195
  %v1232 = vmul.f32 %v1085, %v1195
  %v1233 = vmul.f32 %v1089, %v1195
  %v1234 = vmul.f32 %v1093, %v1195
  %v1235 = vmul.f32 %v1097, %v1195
  %v1236 = vmul.f32 %v1101, %v1195
  %v1237 = vmul.f32 %v1105, %v1195
  %v1238 = vmul.f32 %v1109, %v1195
  %v1239 = vmul.f32 %v1113, %v1195
  %v1240 = vmul.f32 %v1117, %v1195
  %v1241 = vmul.f32 %v1121, %v1195
  %v1242 = vmul.f32 %v1125, %v1195
  %v1243 = vmul.f32 %v1129, %v1195
  %v1244 = vmul.f32 %v1133, %v1195
  %v1245 = vmul.f32 %v1137, %v1195
  %v1246 = vmul.f32 %v1141, %v1195
  %v1247 = vmul.f32 %v1145, %v1195
  %v1248 = vmul.f32 %v1149, %v1195
  %v1249 = vmul.f32 %v1153, %v1195
  %v1250 = vmul.f32 %v1157, %v1195
  %v1251 = vmul.f32 %v1161, %v1195
  %v1252 = vmul.f32 %v1165, %v1195
  %v1253 = vmul.f32 %v1169, %v1195
  %v1254 = vmul.f32 %v1173, %v1195
  %v1255 = vmul.f32 %v1177, %v1195
  %v1256 = vmul.f32 %v1181, %v1195
  %v1257 = vmul.f32 %v1185, %v1195
  %v1258 = vmul.f32 %v1189, %v1195
  %v1259 = vmul.f32 %v1193, %v1195
  %v1260 = vadd.f32 %v875, %v1196
  %v1261 = vadd.f32 %v876, %v1197
  %v1262 = vadd.f32 %v877, %v1198
  %v1263 = vadd.f32 %v878, %v1199
  %v1264 = vadd.f32 %v879, %v1200
  %v1265 = vadd.f32 %v880, %v1201
  %v1266 = vadd.f32 %v881, %v1202
  %v1267 = vadd.f32 %v882, %v1203
  %v1268 = vadd.f32 %v883, %v1204
  %v1269 = vadd.f32 %v884, %v1205
  %v1270 = vadd.f32 %v885, %v1206
  %v1271 = vadd.f32 %v886, %v1207
  %v1272 = vadd.f32 %v887, %v1208
  %v1273 = vadd.f32 %v888, %v1209
  %v1274 = vadd.f32 %v889, %v1210
  %v1275 = vadd.f32 %v890, %v1211
  %v1276 = vadd.f32 %v891, %v1212
  %v1277 = vadd.f32 %v892, %v1213
  %v1278 = vadd.f32 %v893, %v1214
  %v1279 = vadd.f32 %v894, %v1215
  %v1280 = vadd.f32 %v895, %v1216
  %v1281 = vadd.f32 %v896, %v1217
  %v1282 = vadd.f32 %v897, %v1218
  %v1283 = vadd.f32 %v898, %v1219
  %v1284 = vadd.f32 %v899, %v1220
  %v1285 = vadd.f32 %v900, %v1221
  %v1286 = vadd.f32 %v901, %v1222
  %v1287 = vadd.f32 %v902, %v1223
  %v1288 = vadd.f32 %v903, %v1224
  %v1289 = vadd.f32 %v904, %v1225
  %v1290 = vadd.f32 %v905, %v1226
  %v1291 = vadd.f32 %v906, %v1227
  %v1292 = vadd.f32 %v907, %v1228
  %v1293 = vadd.f32 %v908, %v1229
  %v1294 = vadd.f32 %v909, %v1230
  %v1295 = vadd.f32 %v910, %v1231
  %v1296 = vadd.f32 %v911, %v1232
  %v1297 = vadd.f32 %v912, %v1233
  %v1298 = vadd.f32 %v913, %v1234
  %v1299 = vadd.f32 %v914, %v1235
  %v1300 = vadd.f32 %v915, %v1236
  %v1301 = vadd.f32 %v916, %v1237
  %v1302 = vadd.f32 %v917, %v1238
  %v1303 = vadd.f32 %v918, %v1239
  %v1304 = vadd.f32 %v919, %v1240
  %v1305 = vadd.f32 %v920, %v1241
  %v1306 = vadd.f32 %v921, %v1242
  %v1307 = vadd.f32 %v922, %v1243
  %v1308 = vadd.f32 %v923, %v1244
  %v1309 = vadd.f32 %v924, %v1245
  %v1310 = vadd.f32 %v925, %v1246
  %v1311 = vadd.f32 %v926, %v1247
  %v1312 = vadd.f32 %v927, %v1248
  %v1313 = vadd.f32 %v928, %v1249
  %v1314 = vadd.f32 %v929, %v1250
  %v1315 = vadd.f32 %v930, %v1251
  %v1316 = vadd.f32 %v931, %v1252
  %v1317 = vadd.f32 %v932, %v1253
  %v1318 = vadd.f32 %v933, %v1254
  %v1319 = vadd.f32 %v934, %v1255
  %v1320 = vadd.f32 %v935, %v1256
  %v1321 = vadd.f32 %v936, %v1257
  %v1322 = vadd.f32 %v937, %v1258
  %v1323 = vadd.f32 %v938, %v1259
  %1324 = vset.pattern.permute.xlu0 3
  %1325 = vperm.xlu0 %1324, %v36
  %v1326 = vpop.permute.xlu0 %1325
  %1328 = vset.pattern.permute.xlu0 3
  %1329 = vperm.xlu0 %1328, %v37
  %v1330 = vpop.permute.xlu0 %1329
  %1332 = vset.pattern.permute.xlu0 3
  %1333 = vperm.xlu0 %1332, %v38
  %v1334 = vpop.permute.xlu0 %1333
  %1336 = vset.pattern.permute.xlu0 3
  %1337 = vperm.xlu0 %1336, %v39
  %v1338 = vpop.permute.xlu0 %1337
  %1340 = vset.pattern.permute.xlu0 3
  %1341 = vperm.xlu0 %1340, %v40
  %v1342 = vpop.permute.xlu0 %1341
  %1344 = vset.pattern.permute.xlu0 3
  %1345 = vperm.xlu0 %1344, %v41
  %v1346 = vpop.permute.xlu0 %1345
  %1348 = vset.pattern.permute.xlu0 3
  %1349 = vperm.xlu0 %1348, %v42
  %v1350 = vpop.permute.xlu0 %1349
  %1352 = vset.pattern.permute.xlu0 3
  %1353 = vperm.xlu0 %1352, %v43
  %v1354 = vpop.permute.xlu0 %1353
  %1356 = vset.pattern.permute.xlu0 3
  %1357 = vperm.xlu0 %1356, %v44
  %v1358 = vpop.permute.xlu0 %1357
  %1360 = vset.pattern.permute.xlu0 3
  %1361 = vperm.xlu0 %1360, %v45
  %v1362 = vpop.permute.xlu0 %1361
  %1364 = vset.pattern.permute.xlu0 3
  %1365 = vperm.xlu0 %1364, %v46
  %v1366 = vpop.permute.xlu0 %1365
  %1368 = vset.pattern.permute.xlu0 3
  %1369 = vperm.xlu0 %1368, %v47
  %v1370 = vpop.permute.xlu0 %1369
  %1372 = vset.pattern.permute.xlu0 3
  %1373 = vperm.xlu0 %1372, %v48
  %v1374 = vpop.permute.xlu0 %1373
  %1376 = vset.pattern.permute.xlu0 3
  %1377 = vperm.xlu0 %1376, %v49
  %v1378 = vpop.permute.xlu0 %1377
  %1380 = vset.pattern.permute.xlu0 3
  %1381 = vperm.xlu0 %1380, %v50
  %v1382 = vpop.permute.xlu0 %1381
  %1384 = vset.pattern.permute.xlu0 3
  %1385 = vperm.xlu0 %1384, %v51
  %v1386 = vpop.permute.xlu0 %1385
  %1388 = vset.pattern.permute.xlu0 3
  %1389 = vperm.xlu0 %1388, %v52
  %v1390 = vpop.permute.xlu0 %1389
  %1392 = vset.pattern.permute.xlu0 3
  %1393 = vperm.xlu0 %1392, %v53
  %v1394 = vpop.permute.xlu0 %1393
  %1396 = vset.pattern.permute.xlu0 3
  %1397 = vperm.xlu0 %1396, %v54
  %v1398 = vpop.permute.xlu0 %1397
  %1400 = vset.pattern.permute.xlu0 3
  %1401 = vperm.xlu0 %1400, %v55
  %v1402 = vpop.permute.xlu0 %1401
  %1404 = vset.pattern.permute.xlu0 3
  %1405 = vperm.xlu0 %1404, %v56
  %v1406 = vpop.permute.xlu0 %1405
  %1408 = vset.pattern.permute.xlu0 3
  %1409 = vperm.xlu0 %1408, %v57
  %v1410 = vpop.permute.xlu0 %1409
  %1412 = vset.pattern.permute.xlu0 3
  %1413 = vperm.xlu0 %1412, %v58
  %v1414 = vpop.permute.xlu0 %1413
  %1416 = vset.pattern.permute.xlu0 3
  %1417 = vperm.xlu0 %1416, %v59
  %v1418 = vpop.permute.xlu0 %1417
  %1420 = vset.pattern.permute.xlu0 3
  %1421 = vperm.xlu0 %1420, %v60
  %v1422 = vpop.permute.xlu0 %1421
  %1424 = vset.pattern.permute.xlu0 3
  %1425 = vperm.xlu0 %1424, %v61
  %v1426 = vpop.permute.xlu0 %1425
  %1428 = vset.pattern.permute.xlu0 3
  %1429 = vperm.xlu0 %1428, %v62
  %v1430 = vpop.permute.xlu0 %1429
  %1432 = vset.pattern.permute.xlu0 3
  %1433 = vperm.xlu0 %1432, %v63
  %v1434 = vpop.permute.xlu0 %1433
  %1436 = vset.pattern.permute.xlu0 3
  %1437 = vperm.xlu0 %1436, %v64
  %v1438 = vpop.permute.xlu0 %1437
  %1440 = vset.pattern.permute.xlu0 3
  %1441 = vperm.xlu0 %1440, %v65
  %v1442 = vpop.permute.xlu0 %1441
  %1444 = vset.pattern.permute.xlu0 3
  %1445 = vperm.xlu0 %1444, %v66
  %v1446 = vpop.permute.xlu0 %1445
  %1448 = vset.pattern.permute.xlu0 3
  %1449 = vperm.xlu0 %1448, %v67
  %v1450 = vpop.permute.xlu0 %1449
  %1452 = vset.pattern.permute.xlu0 3
  %1453 = vperm.xlu0 %1452, %v68
  %v1454 = vpop.permute.xlu0 %1453
  %1456 = vset.pattern.permute.xlu0 3
  %1457 = vperm.xlu0 %1456, %v69
  %v1458 = vpop.permute.xlu0 %1457
  %1460 = vset.pattern.permute.xlu0 3
  %1461 = vperm.xlu0 %1460, %v70
  %v1462 = vpop.permute.xlu0 %1461
  %1464 = vset.pattern.permute.xlu0 3
  %1465 = vperm.xlu0 %1464, %v71
  %v1466 = vpop.permute.xlu0 %1465
  %1468 = vset.pattern.permute.xlu0 3
  %1469 = vperm.xlu0 %1468, %v72
  %v1470 = vpop.permute.xlu0 %1469
  %1472 = vset.pattern.permute.xlu0 3
  %1473 = vperm.xlu0 %1472, %v73
  %v1474 = vpop.permute.xlu0 %1473
  %1476 = vset.pattern.permute.xlu0 3
  %1477 = vperm.xlu0 %1476, %v74
  %v1478 = vpop.permute.xlu0 %1477
  %1480 = vset.pattern.permute.xlu0 3
  %1481 = vperm.xlu0 %1480, %v75
  %v1482 = vpop.permute.xlu0 %1481
  %1484 = vset.pattern.permute.xlu0 3
  %1485 = vperm.xlu0 %1484, %v76
  %v1486 = vpop.permute.xlu0 %1485
  %1488 = vset.pattern.permute.xlu0 3
  %1489 = vperm.xlu0 %1488, %v77
  %v1490 = vpop.permute.xlu0 %1489
  %1492 = vset.pattern.permute.xlu0 3
  %1493 = vperm.xlu0 %1492, %v78
  %v1494 = vpop.permute.xlu0 %1493
  %1496 = vset.pattern.permute.xlu0 3
  %1497 = vperm.xlu0 %1496, %v79
  %v1498 = vpop.permute.xlu0 %1497
  %1500 = vset.pattern.permute.xlu0 3
  %1501 = vperm.xlu0 %1500, %v80
  %v1502 = vpop.permute.xlu0 %1501
  %1504 = vset.pattern.permute.xlu0 3
  %1505 = vperm.xlu0 %1504, %v81
  %v1506 = vpop.permute.xlu0 %1505
  %1508 = vset.pattern.permute.xlu0 3
  %1509 = vperm.xlu0 %1508, %v82
  %v1510 = vpop.permute.xlu0 %1509
  %1512 = vset.pattern.permute.xlu0 3
  %1513 = vperm.xlu0 %1512, %v83
  %v1514 = vpop.permute.xlu0 %1513
  %1516 = vset.pattern.permute.xlu0 3
  %1517 = vperm.xlu0 %1516, %v84
  %v1518 = vpop.permute.xlu0 %1517
  %1520 = vset.pattern.permute.xlu0 3
  %1521 = vperm.xlu0 %1520, %v85
  %v1522 = vpop.permute.xlu0 %1521
  %1524 = vset.pattern.permute.xlu0 3
  %1525 = vperm.xlu0 %1524, %v86
  %v1526 = vpop.permute.xlu0 %1525
  %1528 = vset.pattern.permute.xlu0 3
  %1529 = vperm.xlu0 %1528, %v87
  %v1530 = vpop.permute.xlu0 %1529
  %1532 = vset.pattern.permute.xlu0 3
  %1533 = vperm.xlu0 %1532, %v88
  %v1534 = vpop.permute.xlu0 %1533
  %1536 = vset.pattern.permute.xlu0 3
  %1537 = vperm.xlu0 %1536, %v89
  %v1538 = vpop.permute.xlu0 %1537
  %1540 = vset.pattern.permute.xlu0 3
  %1541 = vperm.xlu0 %1540, %v90
  %v1542 = vpop.permute.xlu0 %1541
  %1544 = vset.pattern.permute.xlu0 3
  %1545 = vperm.xlu0 %1544, %v91
  %v1546 = vpop.permute.xlu0 %1545
  %1548 = vset.pattern.permute.xlu0 3
  %1549 = vperm.xlu0 %1548, %v92
  %v1550 = vpop.permute.xlu0 %1549
  %1552 = vset.pattern.permute.xlu0 3
  %1553 = vperm.xlu0 %1552, %v93
  %v1554 = vpop.permute.xlu0 %1553
  %1556 = vset.pattern.permute.xlu0 3
  %1557 = vperm.xlu0 %1556, %v94
  %v1558 = vpop.permute.xlu0 %1557
  %1560 = vset.pattern.permute.xlu0 3
  %1561 = vperm.xlu0 %1560, %v95
  %v1562 = vpop.permute.xlu0 %1561
  %1564 = vset.pattern.permute.xlu0 3
  %1565 = vperm.xlu0 %1564, %v96
  %v1566 = vpop.permute.xlu0 %1565
  %1568 = vset.pattern.permute.xlu0 3
  %1569 = vperm.xlu0 %1568, %v97
  %v1570 = vpop.permute.xlu0 %1569
  %1572 = vset.pattern.permute.xlu0 3
  %1573 = vperm.xlu0 %1572, %v98
  %v1574 = vpop.permute.xlu0 %1573
  %1576 = vset.pattern.permute.xlu0 3
  %1577 = vperm.xlu0 %1576, %v99
  %v1578 = vpop.permute.xlu0 %1577
  %v1580 = vperm.slane %v100, 3
  %v1581 = vmul.f32 %v1326, %v1580
  %v1582 = vmul.f32 %v1330, %v1580
  %v1583 = vmul.f32 %v1334, %v1580
  %v1584 = vmul.f32 %v1338, %v1580
  %v1585 = vmul.f32 %v1342, %v1580
  %v1586 = vmul.f32 %v1346, %v1580
  %v1587 = vmul.f32 %v1350, %v1580
  %v1588 = vmul.f32 %v1354, %v1580
  %v1589 = vmul.f32 %v1358, %v1580
  %v1590 = vmul.f32 %v1362, %v1580
  %v1591 = vmul.f32 %v1366, %v1580
  %v1592 = vmul.f32 %v1370, %v1580
  %v1593 = vmul.f32 %v1374, %v1580
  %v1594 = vmul.f32 %v1378, %v1580
  %v1595 = vmul.f32 %v1382, %v1580
  %v1596 = vmul.f32 %v1386, %v1580
  %v1597 = vmul.f32 %v1390, %v1580
  %v1598 = vmul.f32 %v1394, %v1580
  %v1599 = vmul.f32 %v1398, %v1580
  %v1600 = vmul.f32 %v1402, %v1580
  %v1601 = vmul.f32 %v1406, %v1580
  %v1602 = vmul.f32 %v1410, %v1580
  %v1603 = vmul.f32 %v1414, %v1580
  %v1604 = vmul.f32 %v1418, %v1580
  %v1605 = vmul.f32 %v1422, %v1580
  %v1606 = vmul.f32 %v1426, %v1580
  %v1607 = vmul.f32 %v1430, %v1580
  %v1608 = vmul.f32 %v1434, %v1580
  %v1609 = vmul.f32 %v1438, %v1580
  %v1610 = vmul.f32 %v1442, %v1580
  %v1611 = vmul.f32 %v1446, %v1580
  %v1612 = vmul.f32 %v1450, %v1580
  %v1613 = vmul.f32 %v1454, %v1580
  %v1614 = vmul.f32 %v1458, %v1580
  %v1615 = vmul.f32 %v1462, %v1580
  %v1616 = vmul.f32 %v1466, %v1580
  %v1617 = vmul.f32 %v1470, %v1580
  %v1618 = vmul.f32 %v1474, %v1580
  %v1619 = vmul.f32 %v1478, %v1580
  %v1620 = vmul.f32 %v1482, %v1580
  %v1621 = vmul.f32 %v1486, %v1580
  %v1622 = vmul.f32 %v1490, %v1580
  %v1623 = vmul.f32 %v1494, %v1580
  %v1624 = vmul.f32 %v1498, %v1580
  %v1625 = vmul.f32 %v1502, %v1580
  %v1626 = vmul.f32 %v1506, %v1580
  %v1627 = vmul.f32 %v1510, %v1580
  %v1628 = vmul.f32 %v1514, %v1580
  %v1629 = vmul.f32 %v1518, %v1580
  %v1630 = vmul.f32 %v1522, %v1580
  %v1631 = vmul.f32 %v1526, %v1580
  %v1632 = vmul.f32 %v1530, %v1580
  %v1633 = vmul.f32 %v1534, %v1580
  %v1634 = vmul.f32 %v1538, %v1580
  %v1635 = vmul.f32 %v1542, %v1580
  %v1636 = vmul.f32 %v1546, %v1580
  %v1637 = vmul.f32 %v1550, %v1580
  %v1638 = vmul.f32 %v1554, %v1580
  %v1639 = vmul.f32 %v1558, %v1580
  %v1640 = vmul.f32 %v1562, %v1580
  %v1641 = vmul.f32 %v1566, %v1580
  %v1642 = vmul.f32 %v1570, %v1580
  %v1643 = vmul.f32 %v1574, %v1580
  %v1644 = vmul.f32 %v1578, %v1580
  %v1645 = vadd.f32 %v1260, %v1581
  %v1646 = vadd.f32 %v1261, %v1582
  %v1647 = vadd.f32 %v1262, %v1583
  %v1648 = vadd.f32 %v1263, %v1584
  %v1649 = vadd.f32 %v1264, %v1585
  %v1650 = vadd.f32 %v1265, %v1586
  %v1651 = vadd.f32 %v1266, %v1587
  %v1652 = vadd.f32 %v1267, %v1588
  %v1653 = vadd.f32 %v1268, %v1589
  %v1654 = vadd.f32 %v1269, %v1590
  %v1655 = vadd.f32 %v1270, %v1591
  %v1656 = vadd.f32 %v1271, %v1592
  %v1657 = vadd.f32 %v1272, %v1593
  %v1658 = vadd.f32 %v1273, %v1594
  %v1659 = vadd.f32 %v1274, %v1595
  %v1660 = vadd.f32 %v1275, %v1596
  %v1661 = vadd.f32 %v1276, %v1597
  %v1662 = vadd.f32 %v1277, %v1598
  %v1663 = vadd.f32 %v1278, %v1599
  %v1664 = vadd.f32 %v1279, %v1600
  %v1665 = vadd.f32 %v1280, %v1601
  %v1666 = vadd.f32 %v1281, %v1602
  %v1667 = vadd.f32 %v1282, %v1603
  %v1668 = vadd.f32 %v1283, %v1604
  %v1669 = vadd.f32 %v1284, %v1605
  %v1670 = vadd.f32 %v1285, %v1606
  %v1671 = vadd.f32 %v1286, %v1607
  %v1672 = vadd.f32 %v1287, %v1608
  %v1673 = vadd.f32 %v1288, %v1609
  %v1674 = vadd.f32 %v1289, %v1610
  %v1675 = vadd.f32 %v1290, %v1611
  %v1676 = vadd.f32 %v1291, %v1612
  %v1677 = vadd.f32 %v1292, %v1613
  %v1678 = vadd.f32 %v1293, %v1614
  %v1679 = vadd.f32 %v1294, %v1615
  %v1680 = vadd.f32 %v1295, %v1616
  %v1681 = vadd.f32 %v1296, %v1617
  %v1682 = vadd.f32 %v1297, %v1618
  %v1683 = vadd.f32 %v1298, %v1619
  %v1684 = vadd.f32 %v1299, %v1620
  %v1685 = vadd.f32 %v1300, %v1621
  %v1686 = vadd.f32 %v1301, %v1622
  %v1687 = vadd.f32 %v1302, %v1623
  %v1688 = vadd.f32 %v1303, %v1624
  %v1689 = vadd.f32 %v1304, %v1625
  %v1690 = vadd.f32 %v1305, %v1626
  %v1691 = vadd.f32 %v1306, %v1627
  %v1692 = vadd.f32 %v1307, %v1628
  %v1693 = vadd.f32 %v1308, %v1629
  %v1694 = vadd.f32 %v1309, %v1630
  %v1695 = vadd.f32 %v1310, %v1631
  %v1696 = vadd.f32 %v1311, %v1632
  %v1697 = vadd.f32 %v1312, %v1633
  %v1698 = vadd.f32 %v1313, %v1634
  %v1699 = vadd.f32 %v1314, %v1635
  %v1700 = vadd.f32 %v1315, %v1636
  %v1701 = vadd.f32 %v1316, %v1637
  %v1702 = vadd.f32 %v1317, %v1638
  %v1703 = vadd.f32 %v1318, %v1639
  %v1704 = vadd.f32 %v1319, %v1640
  %v1705 = vadd.f32 %v1320, %v1641
  %v1706 = vadd.f32 %v1321, %v1642
  %v1707 = vadd.f32 %v1322, %v1643
  %v1708 = vadd.f32 %v1323, %v1644
  %v1709 = vmax.f32 %v1645, 0.0
  %v1710 = vmax.f32 %v1646, 0.0
  %v1711 = vmax.f32 %v1647, 0.0
  %v1712 = vmax.f32 %v1648, 0.0
  %v1713 = vmax.f32 %v1649, 0.0
  %v1714 = vmax.f32 %v1650, 0.0
  %v1715 = vmax.f32 %v1651, 0.0
  %v1716 = vmax.f32 %v1652, 0.0
  %v1717 = vmax.f32 %v1653, 0.0
  %v1718 = vmax.f32 %v1654, 0.0
  %v1719 = vmax.f32 %v1655, 0.0
  %v1720 = vmax.f32 %v1656, 0.0
  %v1721 = vmax.f32 %v1657, 0.0
  %v1722 = vmax.f32 %v1658, 0.0
  %v1723 = vmax.f32 %v1659, 0.0
  %v1724 = vmax.f32 %v1660, 0.0
  %v1725 = vmax.f32 %v1661, 0.0
  %v1726 = vmax.f32 %v1662, 0.0
  %v1727 = vmax.f32 %v1663, 0.0
  %v1728 = vmax.f32 %v1664, 0.0
  %v1729 = vmax.f32 %v1665, 0.0
  %v1730 = vmax.f32 %v1666, 0.0
  %v1731 = vmax.f32 %v1667, 0.0
  %v1732 = vmax.f32 %v1668, 0.0
  %v1733 = vmax.f32 %v1669, 0.0
  %v1734 = vmax.f32 %v1670, 0.0
  %v1735 = vmax.f32 %v1671, 0.0
  %v1736 = vmax.f32 %v1672, 0.0
  %v1737 = vmax.f32 %v1673, 0.0
  %v1738 = vmax.f32 %v1674, 0.0
  %v1739 = vmax.f32 %v1675, 0.0
  %v1740 = vmax.f32 %v1676, 0.0
  %v1741 = vmax.f32 %v1677, 0.0
  %v1742 = vmax.f32 %v1678, 0.0
  %v1743 = vmax.f32 %v1679, 0.0
  %v1744 = vmax.f32 %v1680, 0.0
  %v1745 = vmax.f32 %v1681, 0.0
  %v1746 = vmax.f32 %v1682, 0.0
  %v1747 = vmax.f32 %v1683, 0.0
  %v1748 = vmax.f32 %v1684, 0.0
  %v1749 = vmax.f32 %v1685, 0.0
  %v1750 = vmax.f32 %v1686, 0.0
  %v1751 = vmax.f32 %v1687, 0.0
  %v1752 = vmax.f32 %v1688, 0.0
  %v1753 = vmax.f32 %v1689, 0.0
  %v1754 = vmax.f32 %v1690, 0.0
  %v1755 = vmax.f32 %v1691, 0.0
  %v1756 = vmax.f32 %v1692, 0.0
  %v1757 = vmax.f32 %v1693, 0.0
  %v1758 = vmax.f32 %v1694, 0.0
  %v1759 = vmax.f32 %v1695, 0.0
  %v1760 = vmax.f32 %v1696, 0.0
  %v1761 = vmax.f32 %v1697, 0.0
  %v1762 = vmax.f32 %v1698, 0.0
  %v1763 = vmax.f32 %v1699, 0.0
  %v1764 = vmax.f32 %v1700, 0.0
  %v1765 = vmax.f32 %v1701, 0.0
  %v1766 = vmax.f32 %v1702, 0.0
  %v1767 = vmax.f32 %v1703, 0.0
  %v1768 = vmax.f32 %v1704, 0.0
  %v1769 = vmax.f32 %v1705, 0.0
  %v1770 = vmax.f32 %v1706, 0.0
  %v1771 = vmax.f32 %v1707, 0.0
  %v1772 = vmax.f32 %v1708, 0.0
  %v1773 = vld [vmem:[%s1] sm:$0xff]
  %v1774 = vld [vmem:[%s1 + $0x8] sm:$0xff]
  %v1775 = vld [vmem:[%s1 + $0x10] sm:$0xff]
  %v1776 = vld [vmem:[%s1 + $0x18] sm:$0xff]
  %v1777 = vld [vmem:[%s1 + $0x20] sm:$0xff]
  %v1778 = vld [vmem:[%s1 + $0x28] sm:$0xff]
  %v1779 = vld [vmem:[%s1 + $0x30] sm:$0xff]
  %v1780 = vld [vmem:[%s1 + $0x38] sm:$0xff]
  %v1781 = vld [vmem:[%s1 + $0x40] sm:$0xff]
  %v1782 = vld [vmem:[%s1 + $0x48] sm:$0xff]
  %v1783 = vld [vmem:[%s1 + $0x50] sm:$0xff]
  %v1784 = vld [vmem:[%s1 + $0x58] sm:$0xff]
  %v1785 = vld [vmem:[%s1 + $0x60] sm:$0xff]
  %v1786 = vld [vmem:[%s1 + $0x68] sm:$0xff]
  %v1787 = vld [vmem:[%s1 + $0x70] sm:$0xff]
  %v1788 = vld [vmem:[%s1 + $0x78] sm:$0xff]
  %v1789 = vld [vmem:[%s1 + $0x80] sm:$0xff]
  %v1790 = vld [vmem:[%s1 + $0x88] sm:$0xff]
  %v1791 = vld [vmem:[%s1 + $0x90] sm:$0xff]
  %v1792 = vld [vmem:[%s1 + $0x98] sm:$0xff]
  %v1793 = vld [vmem:[%s1 + $0xa0] sm:$0xff]
  %v1794 = vld [vmem:[%s1 + $0xa8] sm:$0xff]
  %v1795 = vld [vmem:[%s1 + $0xb0] sm:$0xff]
  %v1796 = vld [vmem:[%s1 + $0xb8] sm:$0xff]
  %v1797 = vld [vmem:[%s1 + $0xc0] sm:$0xff]
  %v1798 = vld [vmem:[%s1 + $0xc8] sm:$0xff]
  %v1799 = vld [vmem:[%s1 + $0xd0] sm:$0xff]
  %v1800 = vld [vmem:[%s1 + $0xd8] sm:$0xff]
  %v1801 = vld [vmem:[%s1 + $0xe0] sm:$0xff]
  %v1802 = vld [vmem:[%s1 + $0xe8] sm:$0xff]
  %v1803 = vld [vmem:[%s1 + $0xf0] sm:$0xff]
  %v1804 = vld [vmem:[%s1 + $0xf8] sm:$0xff]
  %v1805 = vld [vmem:[%s1 + $0x100] sm:$0xff]
  %v1806 = vld [vmem:[%s1 + $0x108] sm:$0xff]
  %v1807 = vld [vmem:[%s1 + $0x110] sm:$0xff]
  %v1808 = vld [vmem:[%s1 + $0x118] sm:$0xff]
  %v1809 = vld [vmem:[%s1 + $0x120] sm:$0xff]
  %v1810 = vld [vmem:[%s1 + $0x128] sm:$0xff]
  %v1811 = vld [vmem:[%s1 + $0x130] sm:$0xff]
  %v1812 = vld [vmem:[%s1 + $0x138] sm:$0xff]
  %v1813 = vld [vmem:[%s1 + $0x140] sm:$0xff]
  %v1814 = vld [vmem:[%s1 + $0x148] sm:$0xff]
  %v1815 = vld [vmem:[%s1 + $0x150] sm:$0xff]
  %v1816 = vld [vmem:[%s1 + $0x158] sm:$0xff]
  %v1817 = vld [vmem:[%s1 + $0x160] sm:$0xff]
  %v1818 = vld [vmem:[%s1 + $0x168] sm:$0xff]
  %v1819 = vld [vmem:[%s1 + $0x170] sm:$0xff]
  %v1820 = vld [vmem:[%s1 + $0x178] sm:$0xff]
  %v1821 = vld [vmem:[%s1 + $0x180] sm:$0xff]
  %v1822 = vld [vmem:[%s1 + $0x188] sm:$0xff]
  %v1823 = vld [vmem:[%s1 + $0x190] sm:$0xff]
  %v1824 = vld [vmem:[%s1 + $0x198] sm:$0xff]
  %v1825 = vld [vmem:[%s1 + $0x1a0] sm:$0xff]
  %v1826 = vld [vmem:[%s1 + $0x1a8] sm:$0xff]
  %v1827 = vld [vmem:[%s1 + $0x1b0] sm:$0xff]
  %v1828 = vld [vmem:[%s1 + $0x1b8] sm:$0xff]
  %v1829 = vld [vmem:[%s1 + $0x1c0] sm:$0xff]
  %v1830 = vld [vmem:[%s1 + $0x1c8] sm:$0xff]
  %v1831 = vld [vmem:[%s1 + $0x1d0] sm:$0xff]
  %v1832 = vld [vmem:[%s1 + $0x1d8] sm:$0xff]
  %v1833 = vld [vmem:[%s1 + $0x1e0] sm:$0xff]
  %v1834 = vld [vmem:[%s1 + $0x1e8] sm:$0xff]
  %v1835 = vld [vmem:[%s1 + $0x1f0] sm:$0xff]
  %v1836 = vld [vmem:[%s1 + $0x1f8] sm:$0xff]
  %v1837 = vpack.c.bf16 %v1777, %v1773
  %v1838 = vpack.c.bf16 %v1778, %v1774
  %v1839 = vpack.c.bf16 %v1779, %v1775
  %v1840 = vpack.c.bf16 %v1780, %v1776
  %v1841 = vpack.c.bf16 %v1785, %v1781
  %v1842 = vpack.c.bf16 %v1786, %v1782
  %v1843 = vpack.c.bf16 %v1787, %v1783
  %v1844 = vpack.c.bf16 %v1788, %v1784
  %v1845 = vpack.c.bf16 %v1793, %v1789
  %v1846 = vpack.c.bf16 %v1794, %v1790
  %v1847 = vpack.c.bf16 %v1795, %v1791
  %v1848 = vpack.c.bf16 %v1796, %v1792
  %v1849 = vpack.c.bf16 %v1801, %v1797
  %v1850 = vpack.c.bf16 %v1802, %v1798
  %v1851 = vpack.c.bf16 %v1803, %v1799
  %v1852 = vpack.c.bf16 %v1804, %v1800
  %v1853 = vpack.c.bf16 %v1809, %v1805
  %v1854 = vpack.c.bf16 %v1810, %v1806
  %v1855 = vpack.c.bf16 %v1811, %v1807
  %v1856 = vpack.c.bf16 %v1812, %v1808
  %v1857 = vpack.c.bf16 %v1817, %v1813
  %v1858 = vpack.c.bf16 %v1818, %v1814
  %v1859 = vpack.c.bf16 %v1819, %v1815
  %v1860 = vpack.c.bf16 %v1820, %v1816
  %v1861 = vpack.c.bf16 %v1825, %v1821
  %v1862 = vpack.c.bf16 %v1826, %v1822
  %v1863 = vpack.c.bf16 %v1827, %v1823
  %v1864 = vpack.c.bf16 %v1828, %v1824
  %v1865 = vpack.c.bf16 %v1833, %v1829
  %v1866 = vpack.c.bf16 %v1834, %v1830
  %v1867 = vpack.c.bf16 %v1835, %v1831
  %v1868 = vpack.c.bf16 %v1836, %v1832
  %v1869 = vpack.c.bf16 %v1710, %v1709
  %v1870 = vpack.c.bf16 %v1712, %v1711
  %v1871 = vpack.c.bf16 %v1714, %v1713
  %v1872 = vpack.c.bf16 %v1716, %v1715
  %v1873 = vpack.c.bf16 %v1718, %v1717
  %v1874 = vpack.c.bf16 %v1720, %v1719
  %v1875 = vpack.c.bf16 %v1722, %v1721
  %v1876 = vpack.c.bf16 %v1724, %v1723
  %v1877 = vpack.c.bf16 %v1726, %v1725
  %v1878 = vpack.c.bf16 %v1728, %v1727
  %v1879 = vpack.c.bf16 %v1730, %v1729
  %v1880 = vpack.c.bf16 %v1732, %v1731
  %v1881 = vpack.c.bf16 %v1734, %v1733
  %v1882 = vpack.c.bf16 %v1736, %v1735
  %v1883 = vpack.c.bf16 %v1738, %v1737
  %v1884 = vpack.c.bf16 %v1740, %v1739
  %v1885 = vpack.c.bf16 %v1742, %v1741
  %v1886 = vpack.c.bf16 %v1744, %v1743
  %v1887 = vpack.c.bf16 %v1746, %v1745
  %v1888 = vpack.c.bf16 %v1748, %v1747
  %v1889 = vpack.c.bf16 %v1750, %v1749
  %v1890 = vpack.c.bf16 %v1752, %v1751
  %v1891 = vpack.c.bf16 %v1754, %v1753
  %v1892 = vpack.c.bf16 %v1756, %v1755
  %v1893 = vpack.c.bf16 %v1758, %v1757
  %v1894 = vpack.c.bf16 %v1760, %v1759
  %v1895 = vpack.c.bf16 %v1762, %v1761
  %v1896 = vpack.c.bf16 %v1764, %v1763
  %v1897 = vpack.c.bf16 %v1766, %v1765
  %v1898 = vpack.c.bf16 %v1768, %v1767
  %v1899 = vpack.c.bf16 %v1770, %v1769
  %v1900 = vpack.c.bf16 %v1772, %v1771
  %1901 = vmatpush.bf16.msra.mxu0 %v1876
  %1902 = vmatpush.bf16.msra.mxu0 %v1875
  %1903 = vmatpush.bf16.msra.mxu0 %v1874
  %1904 = vmatpush.bf16.msra.mxu0 %v1873
  %1905 = vmatpush.bf16.msra.mxu0 %v1872
  %1906 = vmatpush.bf16.msra.mxu0 %v1871
  %1907 = vmatpush.bf16.msra.mxu0 %v1870
  %1908 = vmatpush.bf16.msra.mxu0 %v1869
  %1909 = vmatmul.bf16.gmra.mxu0 %v1837
  %v1910 = vpop.f32.mrf.mxu0
  %v1911 = vadd.f32 0.0, %v1910
  %v1912 = vpop.f32.mrf.mxu0
  %v1913 = vadd.f32 0.0, %v1912
  %1914 = vmatmul.bf16.gmra.mxu0 %v1841
  %v1915 = vpop.f32.mrf.mxu0
  %v1916 = vadd.f32 0.0, %v1915
  %v1917 = vpop.f32.mrf.mxu0
  %v1918 = vadd.f32 0.0, %v1917
  %1919 = vmatmul.bf16.gmra.mxu0 %v1845
  %v1920 = vpop.f32.mrf.mxu0
  %v1921 = vadd.f32 0.0, %v1920
  %v1922 = vpop.f32.mrf.mxu0
  %v1923 = vadd.f32 0.0, %v1922
  %1924 = vmatmul.bf16.gmra.mxu0 %v1849
  %v1925 = vpop.f32.mrf.mxu0
  %v1926 = vadd.f32 0.0, %v1925
  %v1927 = vpop.f32.mrf.mxu0
  %v1928 = vadd.f32 0.0, %v1927
  %1929 = vmatmul.bf16.gmra.mxu0 %v1853
  %v1930 = vpop.f32.mrf.mxu0
  %v1931 = vadd.f32 0.0, %v1930
  %v1932 = vpop.f32.mrf.mxu0
  %v1933 = vadd.f32 0.0, %v1932
  %1934 = vmatmul.bf16.gmra.mxu0 %v1857
  %v1935 = vpop.f32.mrf.mxu0
  %v1936 = vadd.f32 0.0, %v1935
  %v1937 = vpop.f32.mrf.mxu0
  %v1938 = vadd.f32 0.0, %v1937
  %1939 = vmatmul.bf16.gmra.mxu0 %v1861
  %v1940 = vpop.f32.mrf.mxu0
  %v1941 = vadd.f32 0.0, %v1940
  %v1942 = vpop.f32.mrf.mxu0
  %v1943 = vadd.f32 0.0, %v1942
  %1944 = vmatmul.bf16.gmra.mxu0 %v1865
  %v1945 = vpop.f32.mrf.mxu0
  %v1946 = vadd.f32 0.0, %v1945
  %v1947 = vpop.f32.mrf.mxu0
  %v1948 = vadd.f32 0.0, %v1947
  %1949 = vdwg.mxu0
  %1950 = vmatpush.bf16.msra.mxu0 %v1884
  %1951 = vmatpush.bf16.msra.mxu0 %v1883
  %1952 = vmatpush.bf16.msra.mxu0 %v1882
  %1953 = vmatpush.bf16.msra.mxu0 %v1881
  %1954 = vmatpush.bf16.msra.mxu0 %v1880
  %1955 = vmatpush.bf16.msra.mxu0 %v1879
  %1956 = vmatpush.bf16.msra.mxu0 %v1878
  %1957 = vmatpush.bf16.msra.mxu0 %v1877
  %1958 = vmatmul.bf16.gmra.mxu0 %v1838
  %v1959 = vpop.f32.mrf.mxu0
  %v1960 = vadd.f32 %v1911, %v1959
  %v1961 = vpop.f32.mrf.mxu0
  %v1962 = vadd.f32 %v1913, %v1961
  %1963 = vmatmul.bf16.gmra.mxu0 %v1842
  %v1964 = vpop.f32.mrf.mxu0
  %v1965 = vadd.f32 %v1916, %v1964
  %v1966 = vpop.f32.mrf.mxu0
  %v1967 = vadd.f32 %v1918, %v1966
  %1968 = vmatmul.bf16.gmra.mxu0 %v1846
  %v1969 = vpop.f32.mrf.mxu0
  %v1970 = vadd.f32 %v1921, %v1969
  %v1971 = vpop.f32.mrf.mxu0
  %v1972 = vadd.f32 %v1923, %v1971
  %1973 = vmatmul.bf16.gmra.mxu0 %v1850
  %v1974 = vpop.f32.mrf.mxu0
  %v1975 = vadd.f32 %v1926, %v1974
  %v1976 = vpop.f32.mrf.mxu0
  %v1977 = vadd.f32 %v1928, %v1976
  %1978 = vmatmul.bf16.gmra.mxu0 %v1854
  %v1979 = vpop.f32.mrf.mxu0
  %v1980 = vadd.f32 %v1931, %v1979
  %v1981 = vpop.f32.mrf.mxu0
  %v1982 = vadd.f32 %v1933, %v1981
  %1983 = vmatmul.bf16.gmra.mxu0 %v1858
  %v1984 = vpop.f32.mrf.mxu0
  %v1985 = vadd.f32 %v1936, %v1984
  %v1986 = vpop.f32.mrf.mxu0
  %v1987 = vadd.f32 %v1938, %v1986
  %1988 = vmatmul.bf16.gmra.mxu0 %v1862
  %v1989 = vpop.f32.mrf.mxu0
  %v1990 = vadd.f32 %v1941, %v1989
  %v1991 = vpop.f32.mrf.mxu0
  %v1992 = vadd.f32 %v1943, %v1991
  %1993 = vmatmul.bf16.gmra.mxu0 %v1866
  %v1994 = vpop.f32.mrf.mxu0
  %v1995 = vadd.f32 %v1946, %v1994
  %v1996 = vpop.f32.mrf.mxu0
  %v1997 = vadd.f32 %v1948, %v1996
  %1998 = vdwg.mxu0
  %1999 = vmatpush.bf16.msra.mxu0 %v1892
  %2000 = vmatpush.bf16.msra.mxu0 %v1891
  %2001 = vmatpush.bf16.msra.mxu0 %v1890
  %2002 = vmatpush.bf16.msra.mxu0 %v1889
  %2003 = vmatpush.bf16.msra.mxu0 %v1888
  %2004 = vmatpush.bf16.msra.mxu0 %v1887
  %2005 = vmatpush.bf16.msra.mxu0 %v1886
  %2006 = vmatpush.bf16.msra.mxu0 %v1885
  %2007 = vmatmul.bf16.gmra.mxu0 %v1839
  %v2008 = vpop.f32.mrf.mxu0
  %v2009 = vadd.f32 %v1960, %v2008
  %v2010 = vpop.f32.mrf.mxu0
  %v2011 = vadd.f32 %v1962, %v2010
  %2012 = vmatmul.bf16.gmra.mxu0 %v1843
  %v2013 = vpop.f32.mrf.mxu0
  %v2014 = vadd.f32 %v1965, %v2013
  %v2015 = vpop.f32.mrf.mxu0
  %v2016 = vadd.f32 %v1967, %v2015
  %2017 = vmatmul.bf16.gmra.mxu0 %v1847
  %v2018 = vpop.f32.mrf.mxu0
  %v2019 = vadd.f32 %v1970, %v2018
  %v2020 = vpop.f32.mrf.mxu0
  %v2021 = vadd.f32 %v1972, %v2020
  %2022 = vmatmul.bf16.gmra.mxu0 %v1851
  %v2023 = vpop.f32.mrf.mxu0
  %v2024 = vadd.f32 %v1975, %v2023
  %v2025 = vpop.f32.mrf.mxu0
  %v2026 = vadd.f32 %v1977, %v2025
  %2027 = vmatmul.bf16.gmra.mxu0 %v1855
  %v2028 = vpop.f32.mrf.mxu0
  %v2029 = vadd.f32 %v1980, %v2028
  %v2030 = vpop.f32.mrf.mxu0
  %v2031 = vadd.f32 %v1982, %v2030
  %2032 = vmatmul.bf16.gmra.mxu0 %v1859
  %v2033 = vpop.f32.mrf.mxu0
  %v2034 = vadd.f32 %v1985, %v2033
  %v2035 = vpop.f32.mrf.mxu0
  %v2036 = vadd.f32 %v1987, %v2035
  %2037 = vmatmul.bf16.gmra.mxu0 %v1863
  %v2038 = vpop.f32.mrf.mxu0
  %v2039 = vadd.f32 %v1990, %v2038
  %v2040 = vpop.f32.mrf.mxu0
  %v2041 = vadd.f32 %v1992, %v2040
  %2042 = vmatmul.bf16.gmra.mxu0 %v1867
  %v2043 = vpop.f32.mrf.mxu0
  %v2044 = vadd.f32 %v1995, %v2043
  %v2045 = vpop.f32.mrf.mxu0
  %v2046 = vadd.f32 %v1997, %v2045
  %2047 = vdwg.mxu0
  %2048 = vmatpush.bf16.msra.mxu0 %v1900
  %2049 = vmatpush.bf16.msra.mxu0 %v1899
  %2050 = vmatpush.bf16.msra.mxu0 %v1898
  %2051 = vmatpush.bf16.msra.mxu0 %v1897
  %2052 = vmatpush.bf16.msra.mxu0 %v1896
  %2053 = vmatpush.bf16.msra.mxu0 %v1895
  %2054 = vmatpush.bf16.msra.mxu0 %v1894
  %2055 = vmatpush.bf16.msra.mxu0 %v1893
  %2056 = vmatmul.bf16.gmra.mxu0 %v1840
  %v2057 = vpop.f32.mrf.mxu0
  %v2058 = vadd.f32 %v2009, %v2057
  %v2059 = vpop.f32.mrf.mxu0
  %v2060 = vadd.f32 %v2011, %v2059
  %2061 = vmatmul.bf16.gmra.mxu0 %v1844
  %v2062 = vpop.f32.mrf.mxu0
  %v2063 = vadd.f32 %v2014, %v2062
  %v2064 = vpop.f32.mrf.mxu0
  %v2065 = vadd.f32 %v2016, %v2064
  %2066 = vmatmul.bf16.gmra.mxu0 %v1848
  %v2067 = vpop.f32.mrf.mxu0
  %v2068 = vadd.f32 %v2019, %v2067
  %v2069 = vpop.f32.mrf.mxu0
  %v2070 = vadd.f32 %v2021, %v2069
  %2071 = vmatmul.bf16.gmra.mxu0 %v1852
  %v2072 = vpop.f32.mrf.mxu0
  %v2073 = vadd.f32 %v2024, %v2072
  %v2074 = vpop.f32.mrf.mxu0
  %v2075 = vadd.f32 %v2026, %v2074
  %2076 = vmatmul.bf16.gmra.mxu0 %v1856
  %v2077 = vpop.f32.mrf.mxu0
  %v2078 = vadd.f32 %v2029, %v2077
  %v2079 = vpop.f32.mrf.mxu0
  %v2080 = vadd.f32 %v2031, %v2079
  %2081 = vmatmul.bf16.gmra.mxu0 %v1860
  %v2082 = vpop.f32.mrf.mxu0
  %v2083 = vadd.f32 %v2034, %v2082
  %v2084 = vpop.f32.mrf.mxu0
  %v2085 = vadd.f32 %v2036, %v2084
  %2086 = vmatmul.bf16.gmra.mxu0 %v1864
  %v2087 = vpop.f32.mrf.mxu0
  %v2088 = vadd.f32 %v2039, %v2087
  %v2089 = vpop.f32.mrf.mxu0
  %v2090 = vadd.f32 %v2041, %v2089
  %2091 = vmatmul.bf16.gmra.mxu0 %v1868
  %v2092 = vpop.f32.mrf.mxu0
  %v2093 = vadd.f32 %v2044, %v2092
  %v2094 = vpop.f32.mrf.mxu0
  %v2095 = vadd.f32 %v2046, %v2094
  %2096 = vdwg.mxu0
  %v2097 = vld [vmem:[%s4] sm:$0xff]
  %v2098 = vld [vmem:[%s4 + $0x8] sm:$0xff]
  %v2099 = vld [vmem:[%s4 + $0x10] sm:$0xff]
  %v2100 = vld [vmem:[%s4 + $0x18] sm:$0xff]
  %v2101 = vld [vmem:[%s4 + $0x20] sm:$0xff]
  %v2102 = vld [vmem:[%s4 + $0x28] sm:$0xff]
  %v2103 = vld [vmem:[%s4 + $0x30] sm:$0xff]
  %v2104 = vld [vmem:[%s4 + $0x38] sm:$0xff]
  %v2105 = vld [vmem:[%s4 + $0x40] sm:$0xff]
  %v2106 = vld [vmem:[%s4 + $0x48] sm:$0xff]
  %v2107 = vld [vmem:[%s4 + $0x50] sm:$0xff]
  %v2108 = vld [vmem:[%s4 + $0x58] sm:$0xff]
  %v2109 = vld [vmem:[%s4 + $0x60] sm:$0xff]
  %v2110 = vld [vmem:[%s4 + $0x68] sm:$0xff]
  %v2111 = vld [vmem:[%s4 + $0x70] sm:$0xff]
  %v2112 = vld [vmem:[%s4 + $0x78] sm:$0xff]
  %v2113 = vpack.c.bf16 %v2058, %v2058
  %v2114 = vpack.c.bf16 %v2097, %v2097
  %v2115 = vpack.c.bf16 %v2060, %v2060
  %v2116 = vpack.c.bf16 %v2098, %v2098
  %vm2117 = vcmask 64512
  %v2119 = vsel %vm2117, %v2115, 0
  %vm2121 = vcmask 1043456
  %v2123 = vsel %vm2121, %v2116, 0
  %2125 = vmatpush.bf16.msra.mxu0 0
  %2126 = vmatpush.bf16.msra.mxu0 0
  %2127 = vmatpush.bf16.msra.mxu0 0
  %2128 = vmatpush.bf16.msra.mxu0 0
  %2129 = vmatpush.bf16.msra.mxu0 0
  %2130 = vmatpush.bf16.msra.mxu0 0
  %2131 = vmatpush.bf16.msra.mxu0 0
  %2132 = vmatpush.bf16.msra.mxu0 %v2123
  %2133 = vmatmul.bf16.gmra.mxu0 %v2119
  %v2134 = vpop.f32.mrf.mxu0
  %v2135 = vadd.f32 0.0, %v2134
  %v2136 = vpop.f32.mrf.mxu0
  %2137 = vdwg.mxu0
  %v2139 = vsel %vm2117, %v2113, 0
  %v2142 = vsel %vm2121, %v2114, 0
  %2144 = vmatpush.bf16.msra.mxu0 0
  %2145 = vmatpush.bf16.msra.mxu0 0
  %2146 = vmatpush.bf16.msra.mxu0 0
  %2147 = vmatpush.bf16.msra.mxu0 0
  %2148 = vmatpush.bf16.msra.mxu0 0
  %2149 = vmatpush.bf16.msra.mxu0 0
  %2150 = vmatpush.bf16.msra.mxu0 0
  %2151 = vmatpush.bf16.msra.mxu0 %v2142
  %2152 = vmatmul.bf16.gmra.mxu0 %v2139
  %v2153 = vpop.f32.mrf.mxu0
  %v2154 = vadd.f32 %v2135, %v2153
  %v2155 = vpop.f32.mrf.mxu0
  %2156 = vdwg.mxu0
  %v2157 = vpack.c.bf16 %v2063, %v2063
  %v2158 = vpack.c.bf16 %v2099, %v2099
  %v2160 = vsel %vm2117, %v2157, 0
  %v2163 = vsel %vm2121, %v2158, 0
  %2165 = vmatpush.bf16.msra.mxu0 0
  %2166 = vmatpush.bf16.msra.mxu0 0
  %2167 = vmatpush.bf16.msra.mxu0 0
  %2168 = vmatpush.bf16.msra.mxu0 0
  %2169 = vmatpush.bf16.msra.mxu0 0
  %2170 = vmatpush.bf16.msra.mxu0 0
  %2171 = vmatpush.bf16.msra.mxu0 0
  %2172 = vmatpush.bf16.msra.mxu0 %v2163
  %2173 = vmatmul.bf16.gmra.mxu0 %v2160
  %v2174 = vpop.f32.mrf.mxu0
  %v2175 = vadd.f32 0.0, %v2174
  %v2176 = vpop.f32.mrf.mxu0
  %2177 = vdwg.mxu0
  %v2178 = vadd.f32 %v2154, %v2175
  %v2179 = vpack.c.bf16 %v2065, %v2065
  %v2180 = vpack.c.bf16 %v2100, %v2100
  %v2182 = vsel %vm2117, %v2179, 0
  %v2185 = vsel %vm2121, %v2180, 0
  %2187 = vmatpush.bf16.msra.mxu0 0
  %2188 = vmatpush.bf16.msra.mxu0 0
  %2189 = vmatpush.bf16.msra.mxu0 0
  %2190 = vmatpush.bf16.msra.mxu0 0
  %2191 = vmatpush.bf16.msra.mxu0 0
  %2192 = vmatpush.bf16.msra.mxu0 0
  %2193 = vmatpush.bf16.msra.mxu0 0
  %2194 = vmatpush.bf16.msra.mxu0 %v2185
  %2195 = vmatmul.bf16.gmra.mxu0 %v2182
  %v2196 = vpop.f32.mrf.mxu0
  %v2197 = vadd.f32 0.0, %v2196
  %v2198 = vpop.f32.mrf.mxu0
  %2199 = vdwg.mxu0
  %v2200 = vadd.f32 %v2178, %v2197
  %v2201 = vpack.c.bf16 %v2068, %v2068
  %v2202 = vpack.c.bf16 %v2101, %v2101
  %v2204 = vsel %vm2117, %v2201, 0
  %v2207 = vsel %vm2121, %v2202, 0
  %2209 = vmatpush.bf16.msra.mxu0 0
  %2210 = vmatpush.bf16.msra.mxu0 0
  %2211 = vmatpush.bf16.msra.mxu0 0
  %2212 = vmatpush.bf16.msra.mxu0 0
  %2213 = vmatpush.bf16.msra.mxu0 0
  %2214 = vmatpush.bf16.msra.mxu0 0
  %2215 = vmatpush.bf16.msra.mxu0 0
  %2216 = vmatpush.bf16.msra.mxu0 %v2207
  %2217 = vmatmul.bf16.gmra.mxu0 %v2204
  %v2218 = vpop.f32.mrf.mxu0
  %v2219 = vadd.f32 0.0, %v2218
  %v2220 = vpop.f32.mrf.mxu0
  %2221 = vdwg.mxu0
  %v2222 = vadd.f32 %v2200, %v2219
  %v2223 = vpack.c.bf16 %v2070, %v2070
  %v2224 = vpack.c.bf16 %v2102, %v2102
  %v2226 = vsel %vm2117, %v2223, 0
  %v2229 = vsel %vm2121, %v2224, 0
  %2231 = vmatpush.bf16.msra.mxu0 0
  %2232 = vmatpush.bf16.msra.mxu0 0
  %2233 = vmatpush.bf16.msra.mxu0 0
  %2234 = vmatpush.bf16.msra.mxu0 0
  %2235 = vmatpush.bf16.msra.mxu0 0
  %2236 = vmatpush.bf16.msra.mxu0 0
  %2237 = vmatpush.bf16.msra.mxu0 0
  %2238 = vmatpush.bf16.msra.mxu0 %v2229
  %2239 = vmatmul.bf16.gmra.mxu0 %v2226
  %v2240 = vpop.f32.mrf.mxu0
  %v2241 = vadd.f32 0.0, %v2240
  %v2242 = vpop.f32.mrf.mxu0
  %2243 = vdwg.mxu0
  %v2244 = vadd.f32 %v2222, %v2241
  %v2245 = vpack.c.bf16 %v2073, %v2073
  %v2246 = vpack.c.bf16 %v2103, %v2103
  %v2248 = vsel %vm2117, %v2245, 0
  %v2251 = vsel %vm2121, %v2246, 0
  %2253 = vmatpush.bf16.msra.mxu0 0
  %2254 = vmatpush.bf16.msra.mxu0 0
  %2255 = vmatpush.bf16.msra.mxu0 0
  %2256 = vmatpush.bf16.msra.mxu0 0
  %2257 = vmatpush.bf16.msra.mxu0 0
  %2258 = vmatpush.bf16.msra.mxu0 0
  %2259 = vmatpush.bf16.msra.mxu0 0
  %2260 = vmatpush.bf16.msra.mxu0 %v2251
  %2261 = vmatmul.bf16.gmra.mxu0 %v2248
  %v2262 = vpop.f32.mrf.mxu0
  %v2263 = vadd.f32 0.0, %v2262
  %v2264 = vpop.f32.mrf.mxu0
  %2265 = vdwg.mxu0
  %v2266 = vadd.f32 %v2244, %v2263
  %v2267 = vpack.c.bf16 %v2075, %v2075
  %v2268 = vpack.c.bf16 %v2104, %v2104
  %v2270 = vsel %vm2117, %v2267, 0
  %v2273 = vsel %vm2121, %v2268, 0
  %2275 = vmatpush.bf16.msra.mxu0 0
  %2276 = vmatpush.bf16.msra.mxu0 0
  %2277 = vmatpush.bf16.msra.mxu0 0
  %2278 = vmatpush.bf16.msra.mxu0 0
  %2279 = vmatpush.bf16.msra.mxu0 0
  %2280 = vmatpush.bf16.msra.mxu0 0
  %2281 = vmatpush.bf16.msra.mxu0 0
  %2282 = vmatpush.bf16.msra.mxu0 %v2273
  %2283 = vmatmul.bf16.gmra.mxu0 %v2270
  %v2284 = vpop.f32.mrf.mxu0
  %v2285 = vadd.f32 0.0, %v2284
  %v2286 = vpop.f32.mrf.mxu0
  %2287 = vdwg.mxu0
  %v2288 = vadd.f32 %v2266, %v2285
  %v2289 = vpack.c.bf16 %v2078, %v2078
  %v2290 = vpack.c.bf16 %v2105, %v2105
  %v2292 = vsel %vm2117, %v2289, 0
  %v2295 = vsel %vm2121, %v2290, 0
  %2297 = vmatpush.bf16.msra.mxu0 0
  %2298 = vmatpush.bf16.msra.mxu0 0
  %2299 = vmatpush.bf16.msra.mxu0 0
  %2300 = vmatpush.bf16.msra.mxu0 0
  %2301 = vmatpush.bf16.msra.mxu0 0
  %2302 = vmatpush.bf16.msra.mxu0 0
  %2303 = vmatpush.bf16.msra.mxu0 0
  %2304 = vmatpush.bf16.msra.mxu0 %v2295
  %2305 = vmatmul.bf16.gmra.mxu0 %v2292
  %v2306 = vpop.f32.mrf.mxu0
  %v2307 = vadd.f32 0.0, %v2306
  %v2308 = vpop.f32.mrf.mxu0
  %2309 = vdwg.mxu0
  %v2310 = vadd.f32 %v2288, %v2307
  %v2311 = vpack.c.bf16 %v2080, %v2080
  %v2312 = vpack.c.bf16 %v2106, %v2106
  %v2314 = vsel %vm2117, %v2311, 0
  %v2317 = vsel %vm2121, %v2312, 0
  %2319 = vmatpush.bf16.msra.mxu0 0
  %2320 = vmatpush.bf16.msra.mxu0 0
  %2321 = vmatpush.bf16.msra.mxu0 0
  %2322 = vmatpush.bf16.msra.mxu0 0
  %2323 = vmatpush.bf16.msra.mxu0 0
  %2324 = vmatpush.bf16.msra.mxu0 0
  %2325 = vmatpush.bf16.msra.mxu0 0
  %2326 = vmatpush.bf16.msra.mxu0 %v2317
  %2327 = vmatmul.bf16.gmra.mxu0 %v2314
  %v2328 = vpop.f32.mrf.mxu0
  %v2329 = vadd.f32 0.0, %v2328
  %v2330 = vpop.f32.mrf.mxu0
  %2331 = vdwg.mxu0
  %v2332 = vadd.f32 %v2310, %v2329
  %v2333 = vpack.c.bf16 %v2083, %v2083
  %v2334 = vpack.c.bf16 %v2107, %v2107
  %v2336 = vsel %vm2117, %v2333, 0
  %v2339 = vsel %vm2121, %v2334, 0
  %2341 = vmatpush.bf16.msra.mxu0 0
  %2342 = vmatpush.bf16.msra.mxu0 0
  %2343 = vmatpush.bf16.msra.mxu0 0
  %2344 = vmatpush.bf16.msra.mxu0 0
  %2345 = vmatpush.bf16.msra.mxu0 0
  %2346 = vmatpush.bf16.msra.mxu0 0
  %2347 = vmatpush.bf16.msra.mxu0 0
  %2348 = vmatpush.bf16.msra.mxu0 %v2339
  %2349 = vmatmul.bf16.gmra.mxu0 %v2336
  %v2350 = vpop.f32.mrf.mxu0
  %v2351 = vadd.f32 0.0, %v2350
  %v2352 = vpop.f32.mrf.mxu0
  %2353 = vdwg.mxu0
  %v2354 = vadd.f32 %v2332, %v2351
  %v2355 = vpack.c.bf16 %v2085, %v2085
  %v2356 = vpack.c.bf16 %v2108, %v2108
  %v2358 = vsel %vm2117, %v2355, 0
  %v2361 = vsel %vm2121, %v2356, 0
  %2363 = vmatpush.bf16.msra.mxu0 0
  %2364 = vmatpush.bf16.msra.mxu0 0
  %2365 = vmatpush.bf16.msra.mxu0 0
  %2366 = vmatpush.bf16.msra.mxu0 0
  %2367 = vmatpush.bf16.msra.mxu0 0
  %2368 = vmatpush.bf16.msra.mxu0 0
  %2369 = vmatpush.bf16.msra.mxu0 0
  %2370 = vmatpush.bf16.msra.mxu0 %v2361
  %2371 = vmatmul.bf16.gmra.mxu0 %v2358
  %v2372 = vpop.f32.mrf.mxu0
  %v2373 = vadd.f32 0.0, %v2372
  %v2374 = vpop.f32.mrf.mxu0
  %2375 = vdwg.mxu0
  %v2376 = vadd.f32 %v2354, %v2373
  %v2377 = vpack.c.bf16 %v2088, %v2088
  %v2378 = vpack.c.bf16 %v2109, %v2109
  %v2380 = vsel %vm2117, %v2377, 0
  %v2383 = vsel %vm2121, %v2378, 0
  %2385 = vmatpush.bf16.msra.mxu0 0
  %2386 = vmatpush.bf16.msra.mxu0 0
  %2387 = vmatpush.bf16.msra.mxu0 0
  %2388 = vmatpush.bf16.msra.mxu0 0
  %2389 = vmatpush.bf16.msra.mxu0 0
  %2390 = vmatpush.bf16.msra.mxu0 0
  %2391 = vmatpush.bf16.msra.mxu0 0
  %2392 = vmatpush.bf16.msra.mxu0 %v2383
  %2393 = vmatmul.bf16.gmra.mxu0 %v2380
  %v2394 = vpop.f32.mrf.mxu0
  %v2395 = vadd.f32 0.0, %v2394
  %v2396 = vpop.f32.mrf.mxu0
  %2397 = vdwg.mxu0
  %v2398 = vadd.f32 %v2376, %v2395
  %v2399 = vpack.c.bf16 %v2090, %v2090
  %v2400 = vpack.c.bf16 %v2110, %v2110
  %v2402 = vsel %vm2117, %v2399, 0
  %v2405 = vsel %vm2121, %v2400, 0
  %2407 = vmatpush.bf16.msra.mxu0 0
  %2408 = vmatpush.bf16.msra.mxu0 0
  %2409 = vmatpush.bf16.msra.mxu0 0
  %2410 = vmatpush.bf16.msra.mxu0 0
  %2411 = vmatpush.bf16.msra.mxu0 0
  %2412 = vmatpush.bf16.msra.mxu0 0
  %2413 = vmatpush.bf16.msra.mxu0 0
  %2414 = vmatpush.bf16.msra.mxu0 %v2405
  %2415 = vmatmul.bf16.gmra.mxu0 %v2402
  %v2416 = vpop.f32.mrf.mxu0
  %v2417 = vadd.f32 0.0, %v2416
  %v2418 = vpop.f32.mrf.mxu0
  %2419 = vdwg.mxu0
  %v2420 = vadd.f32 %v2398, %v2417
  %v2421 = vpack.c.bf16 %v2093, %v2093
  %v2422 = vpack.c.bf16 %v2111, %v2111
  %v2424 = vsel %vm2117, %v2421, 0
  %v2427 = vsel %vm2121, %v2422, 0
  %2429 = vmatpush.bf16.msra.mxu0 0
  %2430 = vmatpush.bf16.msra.mxu0 0
  %2431 = vmatpush.bf16.msra.mxu0 0
  %2432 = vmatpush.bf16.msra.mxu0 0
  %2433 = vmatpush.bf16.msra.mxu0 0
  %2434 = vmatpush.bf16.msra.mxu0 0
  %2435 = vmatpush.bf16.msra.mxu0 0
  %2436 = vmatpush.bf16.msra.mxu0 %v2427
  %2437 = vmatmul.bf16.gmra.mxu0 %v2424
  %v2438 = vpop.f32.mrf.mxu0
  %v2439 = vadd.f32 0.0, %v2438
  %v2440 = vpop.f32.mrf.mxu0
  %2441 = vdwg.mxu0
  %v2442 = vadd.f32 %v2420, %v2439
  %v2443 = vpack.c.bf16 %v2095, %v2095
  %v2444 = vpack.c.bf16 %v2112, %v2112
  %v2446 = vsel %vm2117, %v2443, 0
  %v2449 = vsel %vm2121, %v2444, 0
  %2451 = vmatpush.bf16.msra.mxu0 0
  %2452 = vmatpush.bf16.msra.mxu0 0
  %2453 = vmatpush.bf16.msra.mxu0 0
  %2454 = vmatpush.bf16.msra.mxu0 0
  %2455 = vmatpush.bf16.msra.mxu0 0
  %2456 = vmatpush.bf16.msra.mxu0 0
  %2457 = vmatpush.bf16.msra.mxu0 0
  %2458 = vmatpush.bf16.msra.mxu0 %v2449
  %2459 = vmatmul.bf16.gmra.mxu0 %v2446
  %v2460 = vpop.f32.mrf.mxu0
  %v2461 = vadd.f32 0.0, %v2460
  %v2462 = vpop.f32.mrf.mxu0
  %2463 = vdwg.mxu0
  %v2464 = vadd.f32 %v2442, %v2461
  %v2465 = vld [vmem:[%s5] sm:$0x1]
  %v2467 = vperm.slane %v2465, 0
  %v2469 = vadd.f32 %v2464, %v2467
  %v2470 = vmax.f32 %v2469, 0.0
  %v2471 = vpack.c.bf16 %v2470, %v2470
  %v2472 = vld [vmem:[%s6] sm:$0xff]
  %v2473 = vld [vmem:[%s6 + $0x8] sm:$0xff]
  %v2474 = vld [vmem:[%s6 + $0x10] sm:$0xff]
  %v2475 = vld [vmem:[%s6 + $0x18] sm:$0xff]
  %v2476 = vpack.c.bf16 %v2473, %v2472
  %v2477 = vpack.c.bf16 %v2475, %v2474
  %v2478 = vld [vmem:[%s7] sm:$0x1]
  %v2480 = vperm.slane %v2478, 0
  %vm2482 = vcmask 261120
  %v2484 = vsel %vm2482, %v2471, 0
  %2486 = vmatpush.bf16.msra.mxu0 0
  %2487 = vmatpush.bf16.msra.mxu0 0
  %2488 = vmatpush.bf16.msra.mxu0 0
  %2489 = vmatpush.bf16.msra.mxu0 0
  %2490 = vmatpush.bf16.msra.mxu0 0
  %2491 = vmatpush.bf16.msra.mxu0 0
  %2492 = vmatpush.bf16.msra.mxu0 %v2477
  %2493 = vmatpush.bf16.msra.mxu0 %v2476
  %2494 = vmatmul.bf16.gmra.mxu0 %v2484
  %v2495 = vpop.f32.mrf.mxu0
  %v2496 = vadd.f32 %v2480, %v2495
  %v2497 = vpop.f32.mrf.mxu0
  %2498 = vdwg.mxu0
  %v2499 = vmax.f32 %v2496, 0.0
  %v2500 = vpack.c.bf16 %v2499, %v2499
  %v2501 = vld [vmem:[%s8] sm:$0xff]
  %v2502 = vld [vmem:[%s8 + $0x8] sm:$0xff]
  %v2503 = vld [vmem:[%s8 + $0x10] sm:$0xff]
  %v2504 = vld [vmem:[%s8 + $0x18] sm:$0xff]
  %v2505 = vpack.c.bf16 %v2502, %v2501
  %v2506 = vpack.c.bf16 %v2504, %v2503
  %v2507 = vld [vmem:[%s9] sm:$0x1]
  %v2509 = vperm.slane %v2507, 0
  %v2512 = vsel %vm2482, %v2500, 0
  %2514 = vmatpush.bf16.msra.mxu0 0
  %2515 = vmatpush.bf16.msra.mxu0 0
  %2516 = vmatpush.bf16.msra.mxu0 0
  %2517 = vmatpush.bf16.msra.mxu0 0
  %2518 = vmatpush.bf16.msra.mxu0 0
  %2519 = vmatpush.bf16.msra.mxu0 0
  %2520 = vmatpush.bf16.msra.mxu0 %v2506
  %2521 = vmatpush.bf16.msra.mxu0 %v2505
  %2522 = vmatmul.bf16.gmra.mxu0 %v2512
  %v2523 = vpop.f32.mrf.mxu0
  %v2524 = vadd.f32 %v2509, %v2523
  %v2525 = vpop.f32.mrf.mxu0
  %2526 = vdwg.mxu0
  %v2527 = vsel %vm2117, %v2524, -inf
  %2528 = vmax.xlane.f32.xlu0 %v2527
  %v2529 = vpop.xlane.xlu0 %2528
  %v2530 = vsub.f32 %v2524, %v2529
  %v2531 = vmul.f32 %v2530, 1.442695
  %v2532 = vpow.pop %v2531
  %v2533 = vsel %vm2117, %v2532, 0.0
  %2534 = vadd.xlane.f32.xlu0 %v2533
  %v2535 = vpop.xlane.xlu0 %2534
  %v2536 = vrcp.pop %v2535
  %v2537 = vmul.f32 %v2532, %v2536
  %2538 = vst [vmem:[%s10] sm:$0xff] 0.0
  %2539 = vst.msk [vmem:[%s10] sm:$0xff] %vm2482, %v2470
  %2541 = vrot.lane.b32.xlu0 %v2537, 32
  %v2542 = vpop.permute.xlu0 %2541
  %vm2544 = vcmask 326912
  %2545 = vst.msk [vmem:[%s10] sm:$0xff] %vm2544, %v2542
  %2547 = vrot.lane.b32.xlu0 %v2524, 32
  %v2548 = vpop.permute.xlu0 %2547
  %vm2550 = vcmask 589120
  %2551 = vst.msk [vmem:[%s10] sm:$0xff] %vm2550, %v2548
  // Predicated region
  $region42: #{forward_extract_roioutput.1} parent=0 // pred_check
    _
  $region43: #{forward_extract_roioutput.1} parent=0 // pred_check_branch
    %2553 = sbr.rel (0) target = $region45
  $region44: #{forward_extract_roioutput.1} parent=0 // pred_region
    _
  $region45: #{forward_extract_roioutput.1} parent=0 // pred_fallthru
    _
  // Predicated region
  $region46: #{forward_extract_roioutput.1} parent=0 // pred_check
    _
  $region47: #{forward_extract_roioutput.1} parent=0 // pred_check_branch
    %2555 = sbr.rel (0) target = $region49
  $region48: #{forward_extract_roioutput.1} parent=0 // pred_region
    _
  $region49: #{forward_extract_roioutput.1} parent=0 // pred_fallthru
    _

</llo_original>
